<compile_context>
chip_gen: v6e
topology: v6e:2x2x1
jax: 0.10.0
libtpu: 0.0.40
codegen_flags: <defaults>
</compile_context>

<pallas_src>
import functools

import jax
import jax.numpy as jnp
from jax.experimental import pallas as pl
from jax.experimental.pallas import tpu as pltpu


def _round_up(x, m):
    return (x + m - 1) // m * m


def _masked_net_kernel(embed_ref,
                       w1_ref, b1_ref, w2_ref, b2_ref,
                       wh_ref, bh_ref,
                       out1_ref, out2_ref, out3_ref,
                       *, scaling, temp, fd):
    """One batch tile: embed_ref (Bt, F*D); outputs (Bt, F*D) x 3."""
    embed = embed_ref[...]                       # (Bt, FD), f32 or bf16
    mxu_dtype = w1_ref.dtype

    # --- hypernet MLP: (Linear -> ReLU) x 2, f32 accumulation on the MXU ---
    h = jnp.dot(embed, w1_ref[...],
                preferred_element_type=jnp.float32) + b1_ref[...]
    h = jnp.maximum(h, 0.0)
    h = jnp.dot(h.astype(mxu_dtype), w2_ref[...],
                preferred_element_type=jnp.float32) + b2_ref[...]
    h = jnp.maximum(h, 0.0)

    # --- all six mask heads fused into a single lane-dense matmul ---
    # wh/bh are pre-expanded to the flattened (F*D) layout in the wrapper, so
    # sigmoid(z) directly yields the per-element (already broadcast) masks.
    z = jnp.dot(h.astype(mxu_dtype), wh_ref[...],
                preferred_element_type=jnp.float32) + bh_ref[...]
    if temp != 1.0:                              # static Python branch
        z = z * temp
    m = jax.nn.sigmoid(z)                        # (Bt, 6*FD), f32 (EUP)

    # --- epilogue: one shared scaled copy, 2 mults per output element ---
    scaled = embed.astype(jnp.float32) * scaling
    out1_ref[...] = scaled * m[:, 0 * fd:1 * fd] * m[:, 3 * fd:4 * fd]
    out2_ref[...] = scaled * m[:, 1 * fd:2 * fd] * m[:, 4 * fd:5 * fd]
    out3_ref[...] = scaled * m[:, 2 * fd:3 * fd] * m[:, 5 * fd:6 * fd]


def _pack_head_params(params, field_num, latent_dim):
    """Expand + concatenate the six head weights to the flattened layout.

    flat index = f*D + d, so:
      field mask (B,F)  -> repeat each column D times  -> (H2, F*D)
      embed mask (B,D)  -> tile the D columns F times  -> (H2, F*D)
    Column order: [fm1 | fm2 | fm3 | em1 | em2 | em3]  -> (H2, 6*F*D).
    """
    F, D = field_num, latent_dim
    wf = [jnp.repeat(params[f"wf{k}"], D, axis=1) for k in (1, 2, 3)]
    bf = [jnp.repeat(params[f"bf{k}"], D, axis=1) for k in (1, 2, 3)]
    we = [jnp.tile(params[f"we{k}"], (1, F)) for k in (1, 2, 3)]
    be = [jnp.tile(params[f"be{k}"], (1, F)) for k in (1, 2, 3)]
    w_heads = jnp.concatenate(wf + we, axis=1)       # (H2, 6*F*D)
    b_heads = jnp.concatenate(bf + be, axis=1)       # (1,  6*F*D)
    return w_heads, b_heads


def masked_net_mask_embedding(embed, params, *, scaling, temp=1.0,
                              b_tile=2048, use_bf16=False):
    """embed: (B, F, D) float32 (already gathered). Returns [out1, out2, out3]."""
    B, F, D = embed.shape
    FD = F * D
    H1 = params["w1"].shape[1]
    H2 = params["w2"].shape[1]

    # Lane-dense flattened layout (matches torch's row-major .view(-1, F*D)).
    embed_flat = embed.reshape(B, FD)
    w_heads, b_heads = _pack_head_params(params, F, D)
    w1, b1, w2, b2 = params["w1"], params["b1"], params["w2"], params["b2"]

    # bf16 for MXU operands only; biases + elementwise stay f32.
    mxu_dtype = jnp.bfloat16 if use_bf16 else jnp.float32
    embed_in = embed_flat.astype(mxu_dtype)
    w1 = w1.astype(mxu_dtype)
    w2 = w2.astype(mxu_dtype)
    w_heads = w_heads.astype(mxu_dtype)

    # Batch tiling (sublane-aligned), pad to a multiple of the tile.
    b_tile = min(b_tile, _round_up(B, 8))
    B_pad = _round_up(B, b_tile)
    if B_pad != B:
        embed_in = jnp.pad(embed_in, ((0, B_pad - B), (0, 0)))
    grid = (B_pad // b_tile,)

    kernel = functools.partial(_masked_net_kernel, scaling=float(scaling),
                               temp=float(temp), fd=FD)

    batch_blk = lambda i: (i, 0)      # per-grid-step batch tile
    resident = lambda i: (0, 0)       # weights stay VMEM-resident

    in_specs = [
        pl.BlockSpec((b_tile, FD), batch_blk),
        pl.BlockSpec((FD, H1), resident),
        pl.BlockSpec((1, H1), resident),
        pl.BlockSpec((H1, H2), resident),
        pl.BlockSpec((1, H2), resident),
        pl.BlockSpec((H2, 6 * FD), resident),
        pl.BlockSpec((1, 6 * FD), resident),
    ]
    out_specs = [pl.BlockSpec((b_tile, FD), batch_blk)] * 3
    out_shape = [jax.ShapeDtypeStruct((B_pad, FD), jnp.float32)] * 3

    # Explicit VMEM budget (sized so it also fits v7x's 64 MiB / 32 MiB scoped):
    # double-buffered input + 3 double-buffered f32 outputs + head activations
    # + resident weights, with headroom.
    blk = b_tile * FD
    weights_bytes = sum(int(a.size) * a.dtype.itemsize
                        for a in (w1, b1, w2, b2, w_heads, b_heads))
    vmem_bytes = (2 * blk * embed_in.dtype.itemsize    # input, double buffered
                  + 3 * 2 * blk * 4                    # outputs, double buffered
                  + 8 * blk * 4                        # z / m / scaled temporaries
                  + 2 * weights_bytes)
    vmem_limit = int(min(max(4 * vmem_bytes, 16 << 20), 32 << 20))

    outs = pl.pallas_call(
        kernel,
        out_shape=out_shape,
        grid=grid,
        in_specs=in_specs,
        out_specs=out_specs,
        compiler_params=pltpu.CompilerParams(
            dimension_semantics=("parallel",),
            vmem_limit_bytes=vmem_limit),
    )(embed_in, w1, b1, w2, b2, w_heads, b_heads)

    return [o[:B].reshape(B, F, D) for o in outs]


def _init_params(key, dnn_dim, mlp_dims, field_num, latent_dim):
    """Deterministic synthetic parameters (not a checkpoint load)."""
    ks = jax.random.split(key, 16)
    h1, h2 = mlp_dims

    def lin(k, fan_in, fan_out):
        return jax.random.normal(k, (fan_in, fan_out), jnp.float32) * 0.05

    return {
        "w1": lin(ks[0], dnn_dim, h1),
        "b1": jax.random.normal(ks[1], (1, h1), jnp.float32) * 0.05,
        "w2": lin(ks[2], h1, h2),
        "b2": jax.random.normal(ks[3], (1, h2), jnp.float32) * 0.05,
        "wf1": lin(ks[4], h2, field_num),
        "bf1": jax.random.normal(ks[5], (1, field_num), jnp.float32) * 0.05,
        "wf2": lin(ks[6], h2, field_num),
        "bf2": jax.random.normal(ks[7], (1, field_num), jnp.float32) * 0.05,
        "wf3": lin(ks[8], h2, field_num),
        "bf3": jax.random.normal(ks[9], (1, field_num), jnp.float32) * 0.05,
        "we1": lin(ks[10], h2, latent_dim),
        "be1": jax.random.normal(ks[11], (1, latent_dim), jnp.float32) * 0.05,
        "we2": lin(ks[12], h2, latent_dim),
        "be2": jax.random.normal(ks[13], (1, latent_dim), jnp.float32) * 0.05,
        "we3": lin(ks[14], h2, latent_dim),
        "be3": jax.random.normal(ks[15], (1, latent_dim), jnp.float32) * 0.05,
    }


def _reference_jax(embed, params, scaling, temp):
    """Pure-JAX f32 re-statement of the torch forward (spec)."""
    B, F, D = embed.shape
    x = embed.reshape(B, F * D)
    h = jnp.maximum(x @ params["w1"] + params["b1"], 0.0)
    h = jnp.maximum(h @ params["w2"] + params["b2"], 0.0)
    sig = lambda w, b: jax.nn.sigmoid(temp * (h @ params[w] + params[b]))
    fm = [sig("wf1", "bf1"), sig("wf2", "bf2"), sig("wf3", "bf3")]
    em = [sig("we1", "be1"), sig("we2", "be2"), sig("we3", "be3")]
    return [embed * scaling * fm[k][:, :, None] * em[k][:, None, :]
            for k in range(3)]


if __name__ == "__main__":
    # Small synthetic config consistent with the module (F*D = 128 lanes).
    batch = 256
    field_num = 8
    latent_dim = 16
    feature_num = 100
    mlp_dims = (32, 32)
    scaling = 2.0
    temp = 1.0
    dnn_dim = field_num * latent_dim

    key = jax.random.PRNGKey(0)
    k_emb, k_x, k_p = jax.random.split(key, 3)

    # FeatureEmbedding table + integer field ids; the gather is plain-JAX glue.
    emb_table = jax.random.normal(k_emb, (feature_num, latent_dim), jnp.float32) * 0.1
    x_idx = jax.random.randint(k_x, (batch, field_num), 0, feature_num)
    embed = emb_table[x_idx]                      # (B, F, D)

    params = _init_params(k_p, dnn_dim, mlp_dims, field_num, latent_dim)
    refs = _reference_jax(embed, params, scaling, temp)

    # f32 path (default): grid of 2 batch tiles of 128 rows, exact vs reference.
    outs = masked_net_mask_embedding(embed, params, scaling=scaling, temp=temp,
                                     b_tile=128, use_bf16=False)
    outs = [jax.block_until_ready(o) for o in outs]
    for o, r in zip(outs, refs):
        assert o.shape == (batch, field_num, latent_dim)
        assert jnp.allclose(o, r, atol=1e-5, rtol=1e-5)

    # bf16 MXU-operand path (v6e/v7x): f32 accumulation + f32 elementwise,
    # compared against the f32 reference with loose tolerance.
    outs_bf = masked_net_mask_embedding(embed, params, scaling=scaling, temp=temp,
                                        b_tile=128, use_bf16=True)
    outs_bf = [jax.block_until_ready(o) for o in outs_bf]
    for o, r in zip(outs_bf, refs):
        assert o.shape == (batch, field_num, latent_dim)
        assert jnp.allclose(o, r, atol=2e-2, rtol=2e-2)

    print("KERNEL_OK")
</pallas_src>

<mosaic_0001>
module attributes {stable_mosaic.version = 11 : i64} {
  func.func @_masked_net_kernel(%arg0: i32, %arg1: memref<128x128xf32, #tpu.memory_space<vmem>>, %arg2: memref<128x32xf32, #tpu.memory_space<vmem>>, %arg3: memref<1x32xf32, #tpu.memory_space<vmem>>, %arg4: memref<32x32xf32, #tpu.memory_space<vmem>>, %arg5: memref<1x32xf32, #tpu.memory_space<vmem>>, %arg6: memref<32x768xf32, #tpu.memory_space<vmem>>, %arg7: memref<1x768xf32, #tpu.memory_space<vmem>>, %arg8: memref<128x128xf32, #tpu.memory_space<vmem>>, %arg9: memref<128x128xf32, #tpu.memory_space<vmem>>, %arg10: memref<128x128xf32, #tpu.memory_space<vmem>>) attributes {dimension_semantics = [#tpu.dimension_semantics<parallel>], iteration_bounds = array<i64: 2>, scalar_prefetch = 0 : i64, scratch_operands = 0 : i64, tpu.core_type = #tpu.core_type<tc>, window_params = [{transform_indices = @transform_0, window_bounds = array<i64: 128, 128>}, {pipeline_mode = #tpu.pipeline_mode<synchronous>, transform_indices = @transform_1, window_bounds = array<i64: 128, 32>}, {pipeline_mode = #tpu.pipeline_mode<synchronous>, transform_indices = @transform_2, window_bounds = array<i64: 1, 32>}, {pipeline_mode = #tpu.pipeline_mode<synchronous>, transform_indices = @transform_3, window_bounds = array<i64: 32, 32>}, {pipeline_mode = #tpu.pipeline_mode<synchronous>, transform_indices = @transform_4, window_bounds = array<i64: 1, 32>}, {pipeline_mode = #tpu.pipeline_mode<synchronous>, transform_indices = @transform_5, window_bounds = array<i64: 32, 768>}, {pipeline_mode = #tpu.pipeline_mode<synchronous>, transform_indices = @transform_6, window_bounds = array<i64: 1, 768>}, {transform_indices = @transform_7, window_bounds = array<i64: 128, 128>}, {transform_indices = @transform_8, window_bounds = array<i64: 128, 128>}, {transform_indices = @transform_9, window_bounds = array<i64: 128, 128>}]} {
    %c0 = arith.constant 0 : index
    %c0_0 = arith.constant 0 : index
    %0 = vector.load %arg1[%c0, %c0_0] : memref<128x128xf32, #tpu.memory_space<vmem>>, vector<128x128xf32>
    %c0_1 = arith.constant 0 : index
    %c0_2 = arith.constant 0 : index
    %1 = vector.load %arg2[%c0_1, %c0_2] : memref<128x32xf32, #tpu.memory_space<vmem>>, vector<128x32xf32>
    %cst = arith.constant dense<0.000000e+00> : vector<128x32xf32>
    %2 = tpu.matmul %0, %1, %cst {dimension_numbers = #tpu.dot_dimension_numbers<[1], [0], [0], [1], [0, 0, 1, 1], [], []>} : vector<128x128xf32>, vector<128x32xf32>, vector<128x32xf32> -> vector<128x32xf32>
    %c0_3 = arith.constant 0 : index
    %c0_4 = arith.constant 0 : index
    %3 = vector.load %arg3[%c0_3, %c0_4] : memref<1x32xf32, #tpu.memory_space<vmem>>, vector<1x32xf32>
    %4 = vector.broadcast %3 : vector<1x32xf32> to vector<128x32xf32>
    %5 = arith.addf %2, %4 : vector<128x32xf32>
    %cst_5 = arith.constant 0.000000e+00 : f32
    %6 = vector.broadcast %cst_5 : f32 to vector<128x32xf32>
    %7 = arith.maximumf %5, %6 : vector<128x32xf32>
    %c0_6 = arith.constant 0 : index
    %c0_7 = arith.constant 0 : index
    %8 = vector.load %arg4[%c0_6, %c0_7] : memref<32x32xf32, #tpu.memory_space<vmem>>, vector<32x32xf32>
    %cst_8 = arith.constant dense<0.000000e+00> : vector<128x32xf32>
    %9 = tpu.matmul %7, %8, %cst_8 {dimension_numbers = #tpu.dot_dimension_numbers<[1], [0], [0], [1], [0, 0, 1, 1], [], []>} : vector<128x32xf32>, vector<32x32xf32>, vector<128x32xf32> -> vector<128x32xf32>
    %c0_9 = arith.constant 0 : index
    %c0_10 = arith.constant 0 : index
    %10 = vector.load %arg5[%c0_9, %c0_10] : memref<1x32xf32, #tpu.memory_space<vmem>>, vector<1x32xf32>
    %11 = vector.broadcast %10 : vector<1x32xf32> to vector<128x32xf32>
    %12 = arith.addf %9, %11 : vector<128x32xf32>
    %cst_11 = arith.constant 0.000000e+00 : f32
    %13 = vector.broadcast %cst_11 : f32 to vector<128x32xf32>
    %14 = arith.maximumf %12, %13 : vector<128x32xf32>
    %c0_12 = arith.constant 0 : index
    %c0_13 = arith.constant 0 : index
    %15 = vector.load %arg6[%c0_12, %c0_13] : memref<32x768xf32, #tpu.memory_space<vmem>>, vector<32x768xf32>
    %cst_14 = arith.constant dense<0.000000e+00> : vector<128x768xf32>
    %16 = tpu.matmul %14, %15, %cst_14 {dimension_numbers = #tpu.dot_dimension_numbers<[1], [0], [0], [1], [0, 0, 1, 1], [], []>} : vector<128x32xf32>, vector<32x768xf32>, vector<128x768xf32> -> vector<128x768xf32>
    %c0_15 = arith.constant 0 : index
    %c0_16 = arith.constant 0 : index
    %17 = vector.load %arg7[%c0_15, %c0_16] : memref<1x768xf32, #tpu.memory_space<vmem>>, vector<1x768xf32>
    %18 = vector.broadcast %17 : vector<1x768xf32> to vector<128x768xf32>
    %19 = arith.addf %16, %18 : vector<128x768xf32>
    %20 = arith.negf %19 : vector<128x768xf32>
    %21 = math.exp %20 : vector<128x768xf32>
    %cst_17 = arith.constant 1.000000e+00 : f32
    %22 = vector.broadcast %cst_17 : f32 to vector<128x768xf32>
    %23 = arith.addf %22, %21 : vector<128x768xf32>
    %24 = arith.divf %22, %23 : vector<128x768xf32>
    %cst_18 = arith.constant 2.000000e+00 : f32
    %25 = vector.broadcast %cst_18 : f32 to vector<128x128xf32>
    %26 = arith.mulf %0, %25 : vector<128x128xf32>
    %27 = vector.extract_strided_slice %24 {offsets = [0, 0], sizes = [128, 128], strides = [1, 1]} : vector<128x768xf32> to vector<128x128xf32>
    %28 = arith.mulf %26, %27 : vector<128x128xf32>
    %29 = vector.extract_strided_slice %24 {offsets = [0, 384], sizes = [128, 128], strides = [1, 1]} : vector<128x768xf32> to vector<128x128xf32>
    %30 = arith.mulf %28, %29 : vector<128x128xf32>
    %c0_19 = arith.constant 0 : index
    %c0_20 = arith.constant 0 : index
    %31 = vector.load %arg8[%c0_19, %c0_20] : memref<128x128xf32, #tpu.memory_space<vmem>>, vector<128x128xf32>
    tpu.vector_store %arg8[%c0_19, %c0_20], %30 {strides = array<i32>} : memref<128x128xf32, #tpu.memory_space<vmem>>, vector<128x128xf32>,
    %32 = vector.extract_strided_slice %24 {offsets = [0, 128], sizes = [128, 128], strides = [1, 1]} : vector<128x768xf32> to vector<128x128xf32>
    %33 = arith.mulf %26, %32 : vector<128x128xf32>
    %34 = vector.extract_strided_slice %24 {offsets = [0, 512], sizes = [128, 128], strides = [1, 1]} : vector<128x768xf32> to vector<128x128xf32>
    %35 = arith.mulf %33, %34 : vector<128x128xf32>
    %c0_21 = arith.constant 0 : index
    %c0_22 = arith.constant 0 : index
    %36 = vector.load %arg9[%c0_21, %c0_22] : memref<128x128xf32, #tpu.memory_space<vmem>>, vector<128x128xf32>
    tpu.vector_store %arg9[%c0_21, %c0_22], %35 {strides = array<i32>} : memref<128x128xf32, #tpu.memory_space<vmem>>, vector<128x128xf32>,
    %37 = vector.extract_strided_slice %24 {offsets = [0, 256], sizes = [128, 128], strides = [1, 1]} : vector<128x768xf32> to vector<128x128xf32>
    %38 = arith.mulf %26, %37 : vector<128x128xf32>
    %39 = vector.extract_strided_slice %24 {offsets = [0, 640], sizes = [128, 128], strides = [1, 1]} : vector<128x768xf32> to vector<128x128xf32>
    %40 = arith.mulf %38, %39 : vector<128x128xf32>
    %c0_23 = arith.constant 0 : index
    %c0_24 = arith.constant 0 : index
    %41 = vector.load %arg10[%c0_23, %c0_24] : memref<128x128xf32, #tpu.memory_space<vmem>>, vector<128x128xf32>
    tpu.vector_store %arg10[%c0_23, %c0_24], %40 {strides = array<i32>} : memref<128x128xf32, #tpu.memory_space<vmem>>, vector<128x128xf32>,
    return
  }
  func.func @transform_0(%arg0: i32) -> (i32, i32) {
    %c0_i32 = arith.constant 0 : i32
    %c0_i32_0 = arith.constant 0 : i32
    return %arg0, %c0_i32 : i32, i32
  }
  func.func @transform_1(%arg0: i32) -> (i32, i32) {
    %c0_i32 = arith.constant 0 : i32
    %c0_i32_0 = arith.constant 0 : i32
    %c0_i32_1 = arith.constant 0 : i32
    return %c0_i32, %c0_i32_0 : i32, i32
  }
  func.func @transform_2(%arg0: i32) -> (i32, i32) {
    %c0_i32 = arith.constant 0 : i32
    %c0_i32_0 = arith.constant 0 : i32
    %c0_i32_1 = arith.constant 0 : i32
    return %c0_i32, %c0_i32_0 : i32, i32
  }
  func.func @transform_3(%arg0: i32) -> (i32, i32) {
    %c0_i32 = arith.constant 0 : i32
    %c0_i32_0 = arith.constant 0 : i32
    %c0_i32_1 = arith.constant 0 : i32
    return %c0_i32, %c0_i32_0 : i32, i32
  }
  func.func @transform_4(%arg0: i32) -> (i32, i32) {
    %c0_i32 = arith.constant 0 : i32
    %c0_i32_0 = arith.constant 0 : i32
    %c0_i32_1 = arith.constant 0 : i32
    return %c0_i32, %c0_i32_0 : i32, i32
  }
  func.func @transform_5(%arg0: i32) -> (i32, i32) {
    %c0_i32 = arith.constant 0 : i32
    %c0_i32_0 = arith.constant 0 : i32
    %c0_i32_1 = arith.constant 0 : i32
    return %c0_i32, %c0_i32_0 : i32, i32
  }
  func.func @transform_6(%arg0: i32) -> (i32, i32) {
    %c0_i32 = arith.constant 0 : i32
    %c0_i32_0 = arith.constant 0 : i32
    %c0_i32_1 = arith.constant 0 : i32
    return %c0_i32, %c0_i32_0 : i32, i32
  }
  func.func @transform_7(%arg0: i32) -> (i32, i32) {
    %c0_i32 = arith.constant 0 : i32
    %c0_i32_0 = arith.constant 0 : i32
    return %arg0, %c0_i32 : i32, i32
  }
  func.func @transform_8(%arg0: i32) -> (i32, i32) {
    %c0_i32 = arith.constant 0 : i32
    %c0_i32_0 = arith.constant 0 : i32
    return %arg0, %c0_i32 : i32, i32
  }
  func.func @transform_9(%arg0: i32) -> (i32, i32) {
    %c0_i32 = arith.constant 0 : i32
    %c0_i32_0 = arith.constant 0 : i32
    return %arg0, %c0_i32 : i32, i32
  }
}

</mosaic_0001>

<llo_original>
// kernel: tpu_custom_call.1
$region0: #{tpu_custom_call.1}
  #allocation0 [shape = 'u32[]', space=smem, size = 0x4, offset = 0x4, fixed_abs, tag = 'smem constant byte address 0x4 - core index']
  #allocation1 [shape = 'u32[144,128]{1,0:T(1,128)}', space=vmem, size = 0x12000, scoped, tag = 'internal scratch']
  %s0 = inlined_call_operand.hbm [shape: f32[256,128], index: 0, kind: input, shape index: {}]
  %s1 = inlined_call_operand.vmem [shape: f32[128,32], index: 1, kind: input, shape index: {}]
  %s2 = inlined_call_operand.vmem [shape: f32[1,32], index: 2, kind: input, shape index: {}]
  %s3 = inlined_call_operand.vmem [shape: f32[32,32], index: 3, kind: input, shape index: {}]
  %s4 = inlined_call_operand.vmem [shape: f32[1,32], index: 4, kind: input, shape index: {}]
  %s5 = inlined_call_operand.hbm [shape: f32[32,768], index: 5, kind: input, shape index: {}]
  %s6 = inlined_call_operand.vmem [shape: f32[1,768], index: 6, kind: input, shape index: {}]
  %s7 = inlined_call_operand.hbm [shape: f32[256,128], index: 7, kind: output, shape index: {0}]
  %s8 = inlined_call_operand.hbm [shape: f32[256,128], index: 8, kind: output, shape index: {1}]
  %s9 = inlined_call_operand.hbm [shape: f32[256,128], index: 9, kind: output, shape index: {2}]
  %10 = xla_tuple %s7, %s8, %s9
  %s11 = sld [smem:[#allocation0]]
  $region85: #{tpu_custom_call.1} parent=0
    _
  %s13 = ssub.s32 1, %s11
  %s14 = scalar_select 0, %s13, %s11
  $region1: #{tpu_custom_call.1} parent=0
    #allocation2 [shape = 'u8[131072]{0}', space=vmem, size = 0x20000, scoped, tag = 'input window, operand 0']
    #allocation3 [shape = 's32[2]{0}', space=sflag, size = 0x8, scoped, tag = 'scoped memory for tpu_custom_call.1']
    #allocation4 [shape = 's32[2]{0}', space=sflag, size = 0x8, scoped, tag = 'scoped memory for tpu_custom_call.1']
    #allocation5 [shape = 'u8[98304]{0}', space=vmem, size = 0x18000, scoped, tag = 'input window, operand 5, single buffered']
    #allocation6 [shape = 's32[1]{0}', space=sflag, size = 0x4, scoped, tag = 'scoped memory for tpu_custom_call.1']
    #allocation7 [shape = 'u8[131072]{0}', space=vmem, size = 0x20000, scoped, tag = 'output window, operand 0']
    #allocation8 [shape = 'u8[131072]{0}', space=vmem, size = 0x20000, scoped, tag = 'output window, operand 1']
    #allocation9 [shape = 's32[2]{0}', space=sflag, size = 0x8, scoped, tag = 'scoped memory for tpu_custom_call.1']
    #allocation10 [shape = 'u8[131072]{0}', space=vmem, size = 0x20000, scoped, tag = 'output window, operand 2']
    %15 = vsyncpa [#allocation3], 0
    %s16 = scalar_lea.sflag [#allocation3], 1
    %17 = vsyncpa %s16, 0
    %18 = vsyncpa [#allocation6], 0
    %19 = vsyncpa [#allocation4], 0
    %s20 = scalar_lea.sflag [#allocation4], 1
    %21 = vsyncpa %s20, 0
    %22 = vsyncpa [#allocation9], 0
    %s23 = scalar_lea.sflag [#allocation9], 1
    %24 = vsyncpa %s23, 0
    loop: start=0, step=1, limit=4
    $region2: #{tpu_custom_call.1} parent=1 // loop_pre_header
      _
    $region3: #{tpu_custom_call.1} parent=1 // loop_header
      %s26 = sphi 0, %s30
      %p27 = scmp.ge.s32.totalorder %s26, 4
      %s36 = sphi 0, %s38
      %s39 = sphi 0, %s36
      %s40 = sphi 0, %s39
      %s56 = sphi 0, %s40
      %s60 = sphi 0, %s60
      %s62 = sphi 0, %s60
      %s63 = sphi 0, %s62
      %s77 = sphi 0, %s63
      %s81 = sphi 0, %s81
      %s83 = sphi 0, %s81
      %s84 = sphi 0, %s83
      %s98 = sphi 0, %s84
      %s102 = sphi 0, %s102
      %s104 = sphi 0, %s102
      %s105 = sphi 0, %s104
      %s119 = sphi 0, %s105
      %s123 = sphi 0, %s123
      %s125 = sphi 0, %s123
      %s126 = sphi 0, %s125
      %s140 = sphi 0, %s126
      %s144 = sphi 0, %s144
      %s146 = sphi 0, %s144
      %s147 = sphi 0, %s146
      %s161 = sphi 0, %s147
      %s165 = sphi 0, %s165
      %s167 = sphi 0, %s165
      %s168 = sphi 0, %s167
      %s182 = sphi 0, %s168
      %s188 = sphi 0, %s190
      %s191 = sphi 0, %s188
      %s192 = sphi 0, %s191
      %s208 = sphi 0, %s192
      %s214 = sphi 0, %s216
      %s217 = sphi 0, %s214
      %s218 = sphi 0, %s217
      %s234 = sphi 0, %s218
      %s240 = sphi 0, %s242
      %s243 = sphi 0, %s240
      %s244 = sphi 0, %s243
      %s260 = sphi 0, %s244
    $region4: #{tpu_custom_call.1} parent=1 // loop_header_branch
      %29 = sbr.rel (%p27) target = $region8
    $region5: #{tpu_custom_call.1} parent=1 // loop_body
      %s31 = ssub.s32 %s26, 1
      %s32 = ssub.s32 %s26, 2
      %s33 = sadd.s32 %s26, 1
      %s34 = ssub.s32 %s26, %s33
      %p35 = scmp.eq.s32.totalorder %s34, 0
      %s37 = sadd.s32 %s36, 1
      %s38 = scalar_select %p35, %s36, %s37
      %p41 = pneg %p35
      %p42 = scmp.eq.s32.totalorder %s26, 1
      %p43 = por %p41, %p42
      %p44 = scmp.ne.s32.totalorder %s36, %s39
      %p45 = scmp.eq.s32.totalorder %s26, 0
      %p46 = por %p44, %p45
      %p47 = scmp.ne.s32.totalorder %s36, %s39
      %p48 = scmp.eq.s32.totalorder %s31, 1
      %p49 = por %p47, %p48
      %p50 = scmp.ne.s32.totalorder %s39, %s40
      %p51 = scmp.eq.s32.totalorder %s31, 0
      %p52 = por %p50, %p51
      %p53 = scmp.ne.s32.totalorder %s39, %s40
      %p54 = scmp.eq.s32.totalorder %s32, 1
      %p55 = por %p53, %p54
      %p57 = scmp.ne.s32.totalorder %s40, %s56
      %p58 = scmp.eq.s32.totalorder %s32, 0
      %p59 = por %p57, %p58
      %s61 = sadd.s32 %s60, 1
      %p64 = scmp.eq.s32.totalorder %s26, 1
      %p65 = scmp.ne.s32.totalorder %s60, %s62
      %p66 = scmp.eq.s32.totalorder %s26, 0
      %p67 = por %p65, %p66
      %p68 = scmp.ne.s32.totalorder %s60, %s62
      %p69 = scmp.eq.s32.totalorder %s31, 1
      %p70 = por %p68, %p69
      %p71 = scmp.ne.s32.totalorder %s62, %s63
      %p72 = scmp.eq.s32.totalorder %s31, 0
      %p73 = por %p71, %p72
      %p74 = scmp.ne.s32.totalorder %s62, %s63
      %p75 = scmp.eq.s32.totalorder %s32, 1
      %p76 = por %p74, %p75
      %p78 = scmp.ne.s32.totalorder %s63, %s77
      %p79 = scmp.eq.s32.totalorder %s32, 0
      %p80 = por %p78, %p79
      %s82 = sadd.s32 %s81, 1
      %p85 = scmp.eq.s32.totalorder %s26, 1
      %p86 = scmp.ne.s32.totalorder %s81, %s83
      %p87 = scmp.eq.s32.totalorder %s26, 0
      %p88 = por %p86, %p87
      %p89 = scmp.ne.s32.totalorder %s81, %s83
      %p90 = scmp.eq.s32.totalorder %s31, 1
      %p91 = por %p89, %p90
      %p92 = scmp.ne.s32.totalorder %s83, %s84
      %p93 = scmp.eq.s32.totalorder %s31, 0
      %p94 = por %p92, %p93
      %p95 = scmp.ne.s32.totalorder %s83, %s84
      %p96 = scmp.eq.s32.totalorder %s32, 1
      %p97 = por %p95, %p96
      %p99 = scmp.ne.s32.totalorder %s84, %s98
      %p100 = scmp.eq.s32.totalorder %s32, 0
      %p101 = por %p99, %p100
      %s103 = sadd.s32 %s102, 1
      %p106 = scmp.eq.s32.totalorder %s26, 1
      %p107 = scmp.ne.s32.totalorder %s102, %s104
      %p108 = scmp.eq.s32.totalorder %s26, 0
      %p109 = por %p107, %p108
      %p110 = scmp.ne.s32.totalorder %s102, %s104
      %p111 = scmp.eq.s32.totalorder %s31, 1
      %p112 = por %p110, %p111
      %p113 = scmp.ne.s32.totalorder %s104, %s105
      %p114 = scmp.eq.s32.totalorder %s31, 0
      %p115 = por %p113, %p114
      %p116 = scmp.ne.s32.totalorder %s104, %s105
      %p117 = scmp.eq.s32.totalorder %s32, 1
      %p118 = por %p116, %p117
      %p120 = scmp.ne.s32.totalorder %s105, %s119
      %p121 = scmp.eq.s32.totalorder %s32, 0
      %p122 = por %p120, %p121
      %s124 = sadd.s32 %s123, 1
      %p127 = scmp.eq.s32.totalorder %s26, 1
      %p128 = scmp.ne.s32.totalorder %s123, %s125
      %p129 = scmp.eq.s32.totalorder %s26, 0
      %p130 = por %p128, %p129
      %p131 = scmp.ne.s32.totalorder %s123, %s125
      %p132 = scmp.eq.s32.totalorder %s31, 1
      %p133 = por %p131, %p132
      %p134 = scmp.ne.s32.totalorder %s125, %s126
      %p135 = scmp.eq.s32.totalorder %s31, 0
      %p136 = por %p134, %p135
      %p137 = scmp.ne.s32.totalorder %s125, %s126
      %p138 = scmp.eq.s32.totalorder %s32, 1
      %p139 = por %p137, %p138
      %p141 = scmp.ne.s32.totalorder %s126, %s140
      %p142 = scmp.eq.s32.totalorder %s32, 0
      %p143 = por %p141, %p142
      %s145 = sadd.s32 %s144, 1
      %p148 = scmp.eq.s32.totalorder %s26, 1
      %p149 = scmp.ne.s32.totalorder %s144, %s146
      %p150 = scmp.eq.s32.totalorder %s26, 0
      %p151 = por %p149, %p150
      %p152 = scmp.ne.s32.totalorder %s144, %s146
      %p153 = scmp.eq.s32.totalorder %s31, 1
      %p154 = por %p152, %p153
      %p155 = scmp.ne.s32.totalorder %s146, %s147
      %p156 = scmp.eq.s32.totalorder %s31, 0
      %p157 = por %p155, %p156
      %p158 = scmp.ne.s32.totalorder %s146, %s147
      %p159 = scmp.eq.s32.totalorder %s32, 1
      %p160 = por %p158, %p159
      %p162 = scmp.ne.s32.totalorder %s147, %s161
      %p163 = scmp.eq.s32.totalorder %s32, 0
      %p164 = por %p162, %p163
      %s166 = sadd.s32 %s165, 1
      %p169 = scmp.eq.s32.totalorder %s26, 1
      %p170 = scmp.ne.s32.totalorder %s165, %s167
      %p171 = scmp.eq.s32.totalorder %s26, 0
      %p172 = por %p170, %p171
      %p173 = scmp.ne.s32.totalorder %s165, %s167
      %p174 = scmp.eq.s32.totalorder %s31, 1
      %p175 = por %p173, %p174
      %p176 = scmp.ne.s32.totalorder %s167, %s168
      %p177 = scmp.eq.s32.totalorder %s31, 0
      %p178 = por %p176, %p177
      %p179 = scmp.ne.s32.totalorder %s167, %s168
      %p180 = scmp.eq.s32.totalorder %s32, 1
      %p181 = por %p179, %p180
      %p183 = scmp.ne.s32.totalorder %s168, %s182
      %p184 = scmp.eq.s32.totalorder %s32, 0
      %p185 = por %p183, %p184
      %s186 = ssub.s32 %s26, %s33
      %p187 = scmp.eq.s32.totalorder %s186, 0
      %s189 = sadd.s32 %s188, 1
      %s190 = scalar_select %p187, %s188, %s189
      %p193 = pneg %p187
      %p194 = scmp.eq.s32.totalorder %s26, 1
      %p195 = por %p193, %p194
      %p196 = scmp.ne.s32.totalorder %s188, %s191
      %p197 = scmp.eq.s32.totalorder %s26, 0
      %p198 = por %p196, %p197
      %p199 = scmp.ne.s32.totalorder %s188, %s191
      %p200 = scmp.eq.s32.totalorder %s31, 1
      %p201 = por %p199, %p200
      %p202 = scmp.ne.s32.totalorder %s191, %s192
      %p203 = scmp.eq.s32.totalorder %s31, 0
      %p204 = por %p202, %p203
      %p205 = scmp.ne.s32.totalorder %s191, %s192
      %p206 = scmp.eq.s32.totalorder %s32, 1
      %p207 = por %p205, %p206
      %p209 = scmp.ne.s32.totalorder %s192, %s208
      %p210 = scmp.eq.s32.totalorder %s32, 0
      %p211 = por %p209, %p210
      %s212 = ssub.s32 %s26, %s33
      %p213 = scmp.eq.s32.totalorder %s212, 0
      %s215 = sadd.s32 %s214, 1
      %s216 = scalar_select %p213, %s214, %s215
      %p219 = pneg %p213
      %p220 = scmp.eq.s32.totalorder %s26, 1
      %p221 = por %p219, %p220
      %p222 = scmp.ne.s32.totalorder %s214, %s217
      %p223 = scmp.eq.s32.totalorder %s26, 0
      %p224 = por %p222, %p223
      %p225 = scmp.ne.s32.totalorder %s214, %s217
      %p226 = scmp.eq.s32.totalorder %s31, 1
      %p227 = por %p225, %p226
      %p228 = scmp.ne.s32.totalorder %s217, %s218
      %p229 = scmp.eq.s32.totalorder %s31, 0
      %p230 = por %p228, %p229
      %p231 = scmp.ne.s32.totalorder %s217, %s218
      %p232 = scmp.eq.s32.totalorder %s32, 1
      %p233 = por %p231, %p232
      %p235 = scmp.ne.s32.totalorder %s218, %s234
      %p236 = scmp.eq.s32.totalorder %s32, 0
      %p237 = por %p235, %p236
      %s238 = ssub.s32 %s26, %s33
      %p239 = scmp.eq.s32.totalorder %s238, 0
      %s241 = sadd.s32 %s240, 1
      %s242 = scalar_select %p239, %s240, %s241
      %p245 = pneg %p239
      %p246 = scmp.eq.s32.totalorder %s26, 1
      %p247 = por %p245, %p246
      %p248 = scmp.ne.s32.totalorder %s240, %s243
      %p249 = scmp.eq.s32.totalorder %s26, 0
      %p250 = por %p248, %p249
      %p251 = scmp.ne.s32.totalorder %s240, %s243
      %p252 = scmp.eq.s32.totalorder %s31, 1
      %p253 = por %p251, %p252
      %p254 = scmp.ne.s32.totalorder %s243, %s244
      %p255 = scmp.eq.s32.totalorder %s31, 0
      %p256 = por %p254, %p255
      %p257 = scmp.ne.s32.totalorder %s243, %s244
      %p258 = scmp.eq.s32.totalorder %s32, 1
      %p259 = por %p257, %p258
      %p261 = scmp.ne.s32.totalorder %s244, %s260
      %p262 = scmp.eq.s32.totalorder %s32, 0
      %p263 = por %p261, %p262
      %p264 = scmp.le.s32.totalorder 1, %s26
      %p265 = scmp.lt.s32.totalorder %s26, 3
      %p266 = pnand %p264, %p265
      %p267 = pneg %p266
      // Predicated region
      $region9: #{tpu_custom_call.1} parent=5 // pred_check
        _
      $region10: #{tpu_custom_call.1} parent=5 // pred_check_branch
        %269 = sbr.rel (%p266) target = $region12
      $region11: #{tpu_custom_call.1} parent=5 // pred_region
        %s270 = ssub.s32 %s26, 1
        // Predicated region
        $region13: #{tpu_custom_call.1} parent=11 // pred_check
          %p271 = pneg %p73
        $region14: #{tpu_custom_call.1} parent=11 // pred_check_branch
          %273 = sbr.rel (%p271) target = $region16
        $region15: #{tpu_custom_call.1} parent=11 // pred_region
          _
        $region16: #{tpu_custom_call.1} parent=11 // pred_fallthru
          _
        // Predicated region
        $region17: #{tpu_custom_call.1} parent=11 // pred_check
          %p274 = pneg %p94
        $region18: #{tpu_custom_call.1} parent=11 // pred_check_branch
          %276 = sbr.rel (%p274) target = $region20
        $region19: #{tpu_custom_call.1} parent=11 // pred_region
          _
        $region20: #{tpu_custom_call.1} parent=11 // pred_fallthru
          _
        // Predicated region
        $region21: #{tpu_custom_call.1} parent=11 // pred_check
          %p277 = pneg %p115
        $region22: #{tpu_custom_call.1} parent=11 // pred_check_branch
          %279 = sbr.rel (%p277) target = $region24
        $region23: #{tpu_custom_call.1} parent=11 // pred_region
          _
        $region24: #{tpu_custom_call.1} parent=11 // pred_fallthru
          _
        // Predicated region
        $region25: #{tpu_custom_call.1} parent=11 // pred_check
          %p280 = pneg %p136
        $region26: #{tpu_custom_call.1} parent=11 // pred_check_branch
          %282 = sbr.rel (%p280) target = $region28
        $region27: #{tpu_custom_call.1} parent=11 // pred_region
          _
        $region28: #{tpu_custom_call.1} parent=11 // pred_fallthru
          _
        // Predicated region
        $region29: #{tpu_custom_call.1} parent=11 // pred_check
          %p283 = pneg %p157
        $region30: #{tpu_custom_call.1} parent=11 // pred_check_branch
          %285 = sbr.rel (%p283) target = $region32
        $region31: #{tpu_custom_call.1} parent=11 // pred_region
          %s287 = ssub.s32 3072, 3072
          %288 = vsyncadd [#allocation6], %s287
          %s289 = sshll.u32 [#allocation5], 4
          %s290 = int_to_ptr.vmem [resolvable:$true] %s289
          %295 = dma.hbm_to_vmem [thread:$0]  %s5, 3072, %s290, [#allocation6], 768, 768, 48
        $region32: #{tpu_custom_call.1} parent=11 // pred_fallthru
          _
        // Predicated region
        $region33: #{tpu_custom_call.1} parent=11 // pred_check
          %p296 = pneg %p178
        $region34: #{tpu_custom_call.1} parent=11 // pred_check_branch
          %298 = sbr.rel (%p296) target = $region36
        $region35: #{tpu_custom_call.1} parent=11 // pred_region
          _
        $region36: #{tpu_custom_call.1} parent=11 // pred_fallthru
          _
      $region12: #{tpu_custom_call.1} parent=5 // pred_fallthru
        _
      %p299 = scmp.lt.s32.totalorder %s26, 2
      // Predicated region
      $region37: #{tpu_custom_call.1} parent=5 // pred_check
        %p300 = pneg %p299
      $region38: #{tpu_custom_call.1} parent=5 // pred_check_branch
        %302 = sbr.rel (%p300) target = $region40
      $region39: #{tpu_custom_call.1} parent=5 // pred_region
        // Predicated region
        $region41: #{tpu_custom_call.1} parent=39 // pred_check
          %p303 = pneg %p46
        $region42: #{tpu_custom_call.1} parent=39 // pred_check_branch
          %305 = sbr.rel (%p303) target = $region44
        $region43: #{tpu_custom_call.1} parent=39 // pred_region
          %s306 = sand.u32 %s36, 1
          %s307 = scalar_lea.sflag [#allocation3], %s306
          %s308 = sand.u32 %s36, 1
          %s309 = smul.addr %s308, 128
          %s310 = scalar_lea.vmem [#allocation2], %s309
          %s311 = smul.u32 16, %s26
          %s313 = ssub.s32 2048, 2048
          %314 = vsyncadd %s307, %s313
          %s315 = smul.addr %s311, 128
          %s316 = scalar_lea.hbm %s0, %s315
          %s317 = sshll.u32 %s310, 4
          %s318 = int_to_ptr.vmem [resolvable:$true] %s317
          %323 = dma.hbm_to_vmem [thread:$0]  %s316, 2048, %s318, %s307, 128, 128, 8
        $region44: #{tpu_custom_call.1} parent=39 // pred_fallthru
          _
      $region40: #{tpu_custom_call.1} parent=5 // pred_fallthru
        _
      %p324 = scmp.le.s32.totalorder 1, %s26
      %p325 = scmp.lt.s32.totalorder %s26, 3
      %p326 = pnand %p324, %p325
      %p327 = pneg %p326
      // Predicated region
      $region45: #{tpu_custom_call.1} parent=5 // pred_check
        _
      $region46: #{tpu_custom_call.1} parent=5 // pred_check_branch
        %329 = sbr.rel (%p326) target = $region48
      $region47: #{tpu_custom_call.1} parent=5 // pred_region
        %s330 = ssub.s32 %s26, 1
        %s331 = sand.u32 %s39, 1
        %s332 = scalar_lea.sflag [#allocation3], %s331
        %s333 = sand.u32 %s39, 1
        %s334 = smul.addr %s333, 128
        %s335 = scalar_lea.vmem [#allocation2], %s334
        // Predicated region
        $region49: #{tpu_custom_call.1} parent=47 // pred_check
          %p336 = pneg %p52
        $region50: #{tpu_custom_call.1} parent=47 // pred_check_branch
          %338 = sbr.rel (%p336) target = $region52
        $region51: #{tpu_custom_call.1} parent=47 // pred_region
          %339 = dma.done %s332, 2048
        $region52: #{tpu_custom_call.1} parent=47 // pred_fallthru
          _
        // Predicated region
        $region53: #{tpu_custom_call.1} parent=47 // pred_check
          %p340 = pneg %p157
        $region54: #{tpu_custom_call.1} parent=47 // pred_check_branch
          %342 = sbr.rel (%p340) target = $region56
        $region55: #{tpu_custom_call.1} parent=47 // pred_region
          %343 = dma.done [#allocation6], 3072
        $region56: #{tpu_custom_call.1} parent=47 // pred_fallthru
          _
        %s344 = sand.u32 %s39, 1
        %s345 = scalar_lea.sflag [#allocation3], %s344
        %s346 = sand.u32 %s39, 1
        %s347 = smul.addr %s346, 128
        %s348 = scalar_lea.vmem [#allocation2], %s347
        %p349 = pneg %p52
        %p350 = pneg %p49
        %p351 = pneg %p73
        %p352 = pneg %p70
        %p353 = pneg %p94
        %p354 = pneg %p91
        %p355 = pneg %p115
        %p356 = pneg %p112
        %p357 = pneg %p136
        %p358 = pneg %p133
        %p359 = pneg %p157
        %p360 = pneg %p154
        %p361 = pneg %p178
        %p362 = pneg %p175
        %p363 = pneg %p204
        %p364 = pneg %p201
        %s365 = sand.u32 %s191, 1
        %s366 = scalar_lea.sflag [#allocation4], %s365
        %s367 = sand.u32 %s191, 1
        %s368 = smul.addr %s367, 128
        %s369 = scalar_lea.vmem [#allocation7], %s368
        %p370 = pneg %p230
        %p371 = pneg %p227
        %s372 = sand.u32 %s31, 1
        %s373 = scalar_lea.sflag [#allocation9], %s372
        %s374 = sand.u32 %s217, 1
        %s375 = smul.addr %s374, 128
        %s376 = scalar_lea.vmem [#allocation8], %s375
        %p377 = pneg %p256
        %p378 = pneg %p253
        %s379 = sand.u32 %s31, 1
        %s380 = scalar_lea.sflag [#allocation9], %s379
        %s381 = sand.u32 %s243, 1
        %s382 = smul.addr %s381, 128
        %s383 = scalar_lea.vmem [#allocation10], %s382
        %s384 = smul.u32 16, %s31
        %s385 = smul.u32 16, %s31
        %s386 = smul.u32 16, %s31
        %s387 = smul.u32 16, %s31
        %v388 = vld [vmem:[%s335] sm:$0xff]
        %v389 = vld [vmem:[%s335 + $0x8] sm:$0xff]
        %v390 = vld [vmem:[%s335 + $0x10] sm:$0xff]
        %v391 = vld [vmem:[%s335 + $0x18] sm:$0xff]
        %v392 = vld [vmem:[%s335 + $0x20] sm:$0xff]
        %v393 = vld [vmem:[%s335 + $0x28] sm:$0xff]
        %v394 = vld [vmem:[%s335 + $0x30] sm:$0xff]
        %v395 = vld [vmem:[%s335 + $0x38] sm:$0xff]
        %v396 = vld [vmem:[%s335 + $0x40] sm:$0xff]
        %v397 = vld [vmem:[%s335 + $0x48] sm:$0xff]
        %v398 = vld [vmem:[%s335 + $0x50] sm:$0xff]
        %v399 = vld [vmem:[%s335 + $0x58] sm:$0xff]
        %v400 = vld [vmem:[%s335 + $0x60] sm:$0xff]
        %v401 = vld [vmem:[%s335 + $0x68] sm:$0xff]
        %v402 = vld [vmem:[%s335 + $0x70] sm:$0xff]
        %v403 = vld [vmem:[%s335 + $0x78] sm:$0xff]
        %v404 = vld [vmem:[%s1] sm:$0xff]
        %v405 = vld [vmem:[%s1 + $0x8] sm:$0xff]
        %v406 = vld [vmem:[%s1 + $0x10] sm:$0xff]
        %v407 = vld [vmem:[%s1 + $0x18] sm:$0xff]
        %v408 = vld [vmem:[%s1 + $0x20] sm:$0xff]
        %v409 = vld [vmem:[%s1 + $0x28] sm:$0xff]
        %v410 = vld [vmem:[%s1 + $0x30] sm:$0xff]
        %v411 = vld [vmem:[%s1 + $0x38] sm:$0xff]
        %v412 = vld [vmem:[%s1 + $0x40] sm:$0xff]
        %v413 = vld [vmem:[%s1 + $0x48] sm:$0xff]
        %v414 = vld [vmem:[%s1 + $0x50] sm:$0xff]
        %v415 = vld [vmem:[%s1 + $0x58] sm:$0xff]
        %v416 = vld [vmem:[%s1 + $0x60] sm:$0xff]
        %v417 = vld [vmem:[%s1 + $0x68] sm:$0xff]
        %v418 = vld [vmem:[%s1 + $0x70] sm:$0xff]
        %v419 = vld [vmem:[%s1 + $0x78] sm:$0xff]
        %v420 = vld [vmem:[%s2] sm:$0x1]
        %v422 = vlaneseq
        %v423 = vshrl.u32 %v422, 7
        %v424 = vsub.s32 0, %v423
        %v425 = vrot.slane %v420, %v424
        %427 = vmatprep.subr.mxu0 0.0
        %428 = vmatpush1.msra.mxu0 %v419
        %429 = vmatprep.subr.mxu0 0.0
        %430 = vmatpush1.msra.mxu0 %v418
        %431 = vmatprep.subr.mxu0 0.0
        %432 = vmatpush1.msra.mxu0 %v417
        %433 = vmatprep.subr.mxu0 0.0
        %434 = vmatpush1.msra.mxu0 %v416
        %435 = vmatprep.subr.mxu0 0.0
        %436 = vmatpush1.msra.mxu0 %v415
        %437 = vmatprep.subr.mxu0 0.0
        %438 = vmatpush1.msra.mxu0 %v414
        %439 = vmatprep.subr.mxu0 0.0
        %440 = vmatpush1.msra.mxu0 %v413
        %441 = vmatprep.subr.mxu0 0.0
        %442 = vmatpush1.msra.mxu0 %v412
        %443 = vmatprep.subr.mxu0 0.0
        %444 = vmatpush1.msra.mxu0 %v411
        %445 = vmatprep.subr.mxu0 0.0
        %446 = vmatpush1.msra.mxu0 %v410
        %447 = vmatprep.subr.mxu0 0.0
        %448 = vmatpush1.msra.mxu0 %v409
        %449 = vmatprep.subr.mxu0 0.0
        %450 = vmatpush1.msra.mxu0 %v408
        %451 = vmatprep.subr.mxu0 0.0
        %452 = vmatpush1.msra.mxu0 %v407
        %453 = vmatprep.subr.mxu0 0.0
        %454 = vmatpush1.msra.mxu0 %v406
        %455 = vmatprep.subr.mxu0 0.0
        %456 = vmatpush1.msra.mxu0 %v405
        %457 = vmatprep.subr.mxu0 0.0
        %458 = vmatpush1.msra.mxu0 %v404
        %459 = vmatprep.subr.mxu0 0.0
        %460 = vmatpush2.msra.mxu0 0.0
        %461 = vmatprep.subr.mxu0 0.0
        %462 = vmatpush2.msra.mxu0 0.0
        %463 = vmatprep.subr.mxu0 0.0
        %464 = vmatpush2.msra.mxu0 0.0
        %465 = vmatprep.subr.mxu0 0.0
        %466 = vmatpush2.msra.mxu0 0.0
        %467 = vmatprep.subr.mxu0 0.0
        %468 = vmatpush2.msra.mxu0 0.0
        %469 = vmatprep.subr.mxu0 0.0
        %470 = vmatpush2.msra.mxu0 0.0
        %471 = vmatprep.subr.mxu0 0.0
        %472 = vmatpush2.msra.mxu0 0.0
        %473 = vmatprep.subr.mxu0 0.0
        %474 = vmatpush2.msra.mxu0 0.0
        %475 = vmatprep.subr.mxu0 0.0
        %476 = vmatpush2.msra.mxu0 0.0
        %477 = vmatprep.subr.mxu0 0.0
        %478 = vmatpush2.msra.mxu0 0.0
        %479 = vmatprep.subr.mxu0 0.0
        %480 = vmatpush2.msra.mxu0 0.0
        %481 = vmatprep.subr.mxu0 0.0
        %482 = vmatpush2.msra.mxu0 0.0
        %483 = vmatprep.subr.mxu0 0.0
        %484 = vmatpush2.msra.mxu0 0.0
        %485 = vmatprep.subr.mxu0 0.0
        %486 = vmatpush2.msra.mxu0 0.0
        %487 = vmatprep.subr.mxu0 0.0
        %488 = vmatpush2.msra.mxu0 0.0
        %489 = vmatprep.subr.mxu0 0.0
        %490 = vmatpush2.msra.mxu0 0.0
        %491 = vmatprep.mubr.f32.mxu0 0.0
        %492 = vmatmul.mubr.f32.gmra.mxu0 %v388
        %v493 = vpop.f32.mrf.mxu0
        %v494 = vadd.f32 %v425, %v493
        %v495 = vpop.f32.mrf.mxu0
        %496 = vmatprep.mubr.f32.mxu0 0.0
        %497 = vmatmul.mubr.f32.gmra.mxu0 %v389
        %v498 = vpop.f32.mrf.mxu0
        %v499 = vadd.f32 %v425, %v498
        %v500 = vpop.f32.mrf.mxu0
        %501 = vmatprep.mubr.f32.mxu0 0.0
        %502 = vmatmul.mubr.f32.gmra.mxu0 %v390
        %v503 = vpop.f32.mrf.mxu0
        %v504 = vadd.f32 %v425, %v503
        %v505 = vpop.f32.mrf.mxu0
        %506 = vmatprep.mubr.f32.mxu0 0.0
        %507 = vmatmul.mubr.f32.gmra.mxu0 %v391
        %v508 = vpop.f32.mrf.mxu0
        %v509 = vadd.f32 %v425, %v508
        %v510 = vpop.f32.mrf.mxu0
        %511 = vmatprep.mubr.f32.mxu0 0.0
        %512 = vmatmul.mubr.f32.gmra.mxu0 %v392
        %v513 = vpop.f32.mrf.mxu0
        %v514 = vadd.f32 %v425, %v513
        %v515 = vpop.f32.mrf.mxu0
        %516 = vmatprep.mubr.f32.mxu0 0.0
        %517 = vmatmul.mubr.f32.gmra.mxu0 %v393
        %v518 = vpop.f32.mrf.mxu0
        %v519 = vadd.f32 %v425, %v518
        %v520 = vpop.f32.mrf.mxu0
        %521 = vmatprep.mubr.f32.mxu0 0.0
        %522 = vmatmul.mubr.f32.gmra.mxu0 %v394
        %v523 = vpop.f32.mrf.mxu0
        %v524 = vadd.f32 %v425, %v523
        %v525 = vpop.f32.mrf.mxu0
        %526 = vmatprep.mubr.f32.mxu0 0.0
        %527 = vmatmul.mubr.f32.gmra.mxu0 %v395
        %v528 = vpop.f32.mrf.mxu0
        %v529 = vadd.f32 %v425, %v528
        %v530 = vpop.f32.mrf.mxu0
        %531 = vmatprep.mubr.f32.mxu0 0.0
        %532 = vmatmul.mubr.f32.gmra.mxu0 %v396
        %v533 = vpop.f32.mrf.mxu0
        %v534 = vadd.f32 %v425, %v533
        %v535 = vpop.f32.mrf.mxu0
        %536 = vmatprep.mubr.f32.mxu0 0.0
        %537 = vmatmul.mubr.f32.gmra.mxu0 %v397
        %v538 = vpop.f32.mrf.mxu0
        %v539 = vadd.f32 %v425, %v538
        %v540 = vpop.f32.mrf.mxu0
        %541 = vmatprep.mubr.f32.mxu0 0.0
        %542 = vmatmul.mubr.f32.gmra.mxu0 %v398
        %v543 = vpop.f32.mrf.mxu0
        %v544 = vadd.f32 %v425, %v543
        %v545 = vpop.f32.mrf.mxu0
        %546 = vmatprep.mubr.f32.mxu0 0.0
        %547 = vmatmul.mubr.f32.gmra.mxu0 %v399
        %v548 = vpop.f32.mrf.mxu0
        %v549 = vadd.f32 %v425, %v548
        %v550 = vpop.f32.mrf.mxu0
        %551 = vmatprep.mubr.f32.mxu0 0.0
        %552 = vmatmul.mubr.f32.gmra.mxu0 %v400
        %v553 = vpop.f32.mrf.mxu0
        %v554 = vadd.f32 %v425, %v553
        %v555 = vpop.f32.mrf.mxu0
        %556 = vmatprep.mubr.f32.mxu0 0.0
        %557 = vmatmul.mubr.f32.gmra.mxu0 %v401
        %v558 = vpop.f32.mrf.mxu0
        %v559 = vadd.f32 %v425, %v558
        %v560 = vpop.f32.mrf.mxu0
        %561 = vmatprep.mubr.f32.mxu0 0.0
        %562 = vmatmul.mubr.f32.gmra.mxu0 %v402
        %v563 = vpop.f32.mrf.mxu0
        %v564 = vadd.f32 %v425, %v563
        %v565 = vpop.f32.mrf.mxu0
        %566 = vmatprep.mubr.f32.mxu0 0.0
        %567 = vmatmul.mubr.f32.gmra.mxu0 %v403
        %v568 = vpop.f32.mrf.mxu0
        %v569 = vadd.f32 %v425, %v568
        %v570 = vpop.f32.mrf.mxu0
        %571 = vdwg.mxu0
        %v572 = vmax.f32 %v494, 0.0
        %v573 = vmax.f32 %v499, 0.0
        %v574 = vmax.f32 %v504, 0.0
        %v575 = vmax.f32 %v509, 0.0
        %v576 = vmax.f32 %v514, 0.0
        %v577 = vmax.f32 %v519, 0.0
        %v578 = vmax.f32 %v524, 0.0
        %v579 = vmax.f32 %v529, 0.0
        %v580 = vmax.f32 %v534, 0.0
        %v581 = vmax.f32 %v539, 0.0
        %v582 = vmax.f32 %v544, 0.0
        %v583 = vmax.f32 %v549, 0.0
        %v584 = vmax.f32 %v554, 0.0
        %v585 = vmax.f32 %v559, 0.0
        %v586 = vmax.f32 %v564, 0.0
        %v587 = vmax.f32 %v569, 0.0
        %v588 = vld [vmem:[%s3] sm:$0xff]
        %v589 = vld [vmem:[%s3 + $0x8] sm:$0xff]
        %v590 = vld [vmem:[%s3 + $0x10] sm:$0xff]
        %v591 = vld [vmem:[%s3 + $0x18] sm:$0xff]
        %v592 = vld [vmem:[%s4] sm:$0x1]
        %v594 = vlaneseq
        %v595 = vshrl.u32 %v594, 7
        %v596 = vsub.s32 0, %v595
        %v597 = vrot.slane %v592, %v596
        %vm599 = vcmask 261120
        %v601 = vsel %vm599, %v572, 0
        %v604 = vsel %vm599, %v573, 0
        %v607 = vsel %vm599, %v574, 0
        %v610 = vsel %vm599, %v575, 0
        %v613 = vsel %vm599, %v576, 0
        %v616 = vsel %vm599, %v577, 0
        %v619 = vsel %vm599, %v578, 0
        %v622 = vsel %vm599, %v579, 0
        %v625 = vsel %vm599, %v580, 0
        %v628 = vsel %vm599, %v581, 0
        %v631 = vsel %vm599, %v582, 0
        %v634 = vsel %vm599, %v583, 0
        %v637 = vsel %vm599, %v584, 0
        %v640 = vsel %vm599, %v585, 0
        %v643 = vsel %vm599, %v586, 0
        %v646 = vsel %vm599, %v587, 0
        %648 = vmatprep.subr.mxu0 0.0
        %649 = vmatpush1.msra.mxu0 0.0
        %650 = vmatprep.subr.mxu0 0.0
        %651 = vmatpush1.msra.mxu0 0.0
        %652 = vmatprep.subr.mxu0 0.0
        %653 = vmatpush1.msra.mxu0 0.0
        %654 = vmatprep.subr.mxu0 0.0
        %655 = vmatpush1.msra.mxu0 0.0
        %656 = vmatprep.subr.mxu0 0.0
        %657 = vmatpush1.msra.mxu0 0.0
        %658 = vmatprep.subr.mxu0 0.0
        %659 = vmatpush1.msra.mxu0 0.0
        %660 = vmatprep.subr.mxu0 0.0
        %661 = vmatpush1.msra.mxu0 0.0
        %662 = vmatprep.subr.mxu0 0.0
        %663 = vmatpush1.msra.mxu0 0.0
        %664 = vmatprep.subr.mxu0 0.0
        %665 = vmatpush1.msra.mxu0 0.0
        %666 = vmatprep.subr.mxu0 0.0
        %667 = vmatpush1.msra.mxu0 0.0
        %668 = vmatprep.subr.mxu0 0.0
        %669 = vmatpush1.msra.mxu0 0.0
        %670 = vmatprep.subr.mxu0 0.0
        %671 = vmatpush1.msra.mxu0 0.0
        %672 = vmatprep.subr.mxu0 0.0
        %673 = vmatpush1.msra.mxu0 %v591
        %674 = vmatprep.subr.mxu0 0.0
        %675 = vmatpush1.msra.mxu0 %v590
        %676 = vmatprep.subr.mxu0 0.0
        %677 = vmatpush1.msra.mxu0 %v589
        %678 = vmatprep.subr.mxu0 0.0
        %679 = vmatpush1.msra.mxu0 %v588
        %680 = vmatprep.subr.mxu0 0.0
        %681 = vmatpush2.msra.mxu0 0.0
        %682 = vmatprep.subr.mxu0 0.0
        %683 = vmatpush2.msra.mxu0 0.0
        %684 = vmatprep.subr.mxu0 0.0
        %685 = vmatpush2.msra.mxu0 0.0
        %686 = vmatprep.subr.mxu0 0.0
        %687 = vmatpush2.msra.mxu0 0.0
        %688 = vmatprep.subr.mxu0 0.0
        %689 = vmatpush2.msra.mxu0 0.0
        %690 = vmatprep.subr.mxu0 0.0
        %691 = vmatpush2.msra.mxu0 0.0
        %692 = vmatprep.subr.mxu0 0.0
        %693 = vmatpush2.msra.mxu0 0.0
        %694 = vmatprep.subr.mxu0 0.0
        %695 = vmatpush2.msra.mxu0 0.0
        %696 = vmatprep.subr.mxu0 0.0
        %697 = vmatpush2.msra.mxu0 0.0
        %698 = vmatprep.subr.mxu0 0.0
        %699 = vmatpush2.msra.mxu0 0.0
        %700 = vmatprep.subr.mxu0 0.0
        %701 = vmatpush2.msra.mxu0 0.0
        %702 = vmatprep.subr.mxu0 0.0
        %703 = vmatpush2.msra.mxu0 0.0
        %704 = vmatprep.subr.mxu0 0.0
        %705 = vmatpush2.msra.mxu0 0.0
        %706 = vmatprep.subr.mxu0 0.0
        %707 = vmatpush2.msra.mxu0 0.0
        %708 = vmatprep.subr.mxu0 0.0
        %709 = vmatpush2.msra.mxu0 0.0
        %710 = vmatprep.subr.mxu0 0.0
        %711 = vmatpush2.msra.mxu0 0.0
        %712 = vmatprep.mubr.f32.mxu0 0.0
        %713 = vmatmul.mubr.f32.gmra.mxu0 %v601
        %v714 = vpop.f32.mrf.mxu0
        %v715 = vadd.f32 %v597, %v714
        %v716 = vpop.f32.mrf.mxu0
        %717 = vmatprep.mubr.f32.mxu0 0.0
        %718 = vmatmul.mubr.f32.gmra.mxu0 %v604
        %v719 = vpop.f32.mrf.mxu0
        %v720 = vadd.f32 %v597, %v719
        %v721 = vpop.f32.mrf.mxu0
        %722 = vmatprep.mubr.f32.mxu0 0.0
        %723 = vmatmul.mubr.f32.gmra.mxu0 %v607
        %v724 = vpop.f32.mrf.mxu0
        %v725 = vadd.f32 %v597, %v724
        %v726 = vpop.f32.mrf.mxu0
        %727 = vmatprep.mubr.f32.mxu0 0.0
        %728 = vmatmul.mubr.f32.gmra.mxu0 %v610
        %v729 = vpop.f32.mrf.mxu0
        %v730 = vadd.f32 %v597, %v729
        %v731 = vpop.f32.mrf.mxu0
        %732 = vmatprep.mubr.f32.mxu0 0.0
        %733 = vmatmul.mubr.f32.gmra.mxu0 %v613
        %v734 = vpop.f32.mrf.mxu0
        %v735 = vadd.f32 %v597, %v734
        %v736 = vpop.f32.mrf.mxu0
        %737 = vmatprep.mubr.f32.mxu0 0.0
        %738 = vmatmul.mubr.f32.gmra.mxu0 %v616
        %v739 = vpop.f32.mrf.mxu0
        %v740 = vadd.f32 %v597, %v739
        %v741 = vpop.f32.mrf.mxu0
        %742 = vmatprep.mubr.f32.mxu0 0.0
        %743 = vmatmul.mubr.f32.gmra.mxu0 %v619
        %v744 = vpop.f32.mrf.mxu0
        %v745 = vadd.f32 %v597, %v744
        %v746 = vpop.f32.mrf.mxu0
        %747 = vmatprep.mubr.f32.mxu0 0.0
        %748 = vmatmul.mubr.f32.gmra.mxu0 %v622
        %v749 = vpop.f32.mrf.mxu0
        %v750 = vadd.f32 %v597, %v749
        %v751 = vpop.f32.mrf.mxu0
        %752 = vmatprep.mubr.f32.mxu0 0.0
        %753 = vmatmul.mubr.f32.gmra.mxu0 %v625
        %v754 = vpop.f32.mrf.mxu0
        %v755 = vadd.f32 %v597, %v754
        %v756 = vpop.f32.mrf.mxu0
        %757 = vmatprep.mubr.f32.mxu0 0.0
        %758 = vmatmul.mubr.f32.gmra.mxu0 %v628
        %v759 = vpop.f32.mrf.mxu0
        %v760 = vadd.f32 %v597, %v759
        %v761 = vpop.f32.mrf.mxu0
        %762 = vmatprep.mubr.f32.mxu0 0.0
        %763 = vmatmul.mubr.f32.gmra.mxu0 %v631
        %v764 = vpop.f32.mrf.mxu0
        %v765 = vadd.f32 %v597, %v764
        %v766 = vpop.f32.mrf.mxu0
        %767 = vmatprep.mubr.f32.mxu0 0.0
        %768 = vmatmul.mubr.f32.gmra.mxu0 %v634
        %v769 = vpop.f32.mrf.mxu0
        %v770 = vadd.f32 %v597, %v769
        %v771 = vpop.f32.mrf.mxu0
        %772 = vmatprep.mubr.f32.mxu0 0.0
        %773 = vmatmul.mubr.f32.gmra.mxu0 %v637
        %v774 = vpop.f32.mrf.mxu0
        %v775 = vadd.f32 %v597, %v774
        %v776 = vpop.f32.mrf.mxu0
        %777 = vmatprep.mubr.f32.mxu0 0.0
        %778 = vmatmul.mubr.f32.gmra.mxu0 %v640
        %v779 = vpop.f32.mrf.mxu0
        %v780 = vadd.f32 %v597, %v779
        %v781 = vpop.f32.mrf.mxu0
        %782 = vmatprep.mubr.f32.mxu0 0.0
        %783 = vmatmul.mubr.f32.gmra.mxu0 %v643
        %v784 = vpop.f32.mrf.mxu0
        %v785 = vadd.f32 %v597, %v784
        %v786 = vpop.f32.mrf.mxu0
        %787 = vmatprep.mubr.f32.mxu0 0.0
        %788 = vmatmul.mubr.f32.gmra.mxu0 %v646
        %v789 = vpop.f32.mrf.mxu0
        %v790 = vadd.f32 %v597, %v789
        %v791 = vpop.f32.mrf.mxu0
        %792 = vdwg.mxu0
        %v793 = vmax.f32 %v715, 0.0
        %v794 = vmax.f32 %v720, 0.0
        %v795 = vmax.f32 %v725, 0.0
        %v796 = vmax.f32 %v730, 0.0
        %v797 = vmax.f32 %v735, 0.0
        %v798 = vmax.f32 %v740, 0.0
        %v799 = vmax.f32 %v745, 0.0
        %v800 = vmax.f32 %v750, 0.0
        %v801 = vmax.f32 %v755, 0.0
        %v802 = vmax.f32 %v760, 0.0
        %v803 = vmax.f32 %v765, 0.0
        %v804 = vmax.f32 %v770, 0.0
        %v805 = vmax.f32 %v775, 0.0
        %v806 = vmax.f32 %v780, 0.0
        %v807 = vmax.f32 %v785, 0.0
        %v808 = vmax.f32 %v790, 0.0
        %v809 = vld [vmem:[#allocation5] sm:$0xff]
        %v810 = vld [vmem:[#allocation5 + $0x8] sm:$0xff]
        %v811 = vld [vmem:[#allocation5 + $0x10] sm:$0xff]
        %v812 = vld [vmem:[#allocation5 + $0x18] sm:$0xff]
        %v813 = vld [vmem:[#allocation5 + $0x20] sm:$0xff]
        %v814 = vld [vmem:[#allocation5 + $0x28] sm:$0xff]
        %v815 = vld [vmem:[#allocation5 + $0x30] sm:$0xff]
        %v816 = vld [vmem:[#allocation5 + $0x38] sm:$0xff]
        %v817 = vld [vmem:[#allocation5 + $0x40] sm:$0xff]
        %v818 = vld [vmem:[#allocation5 + $0x48] sm:$0xff]
        %v819 = vld [vmem:[#allocation5 + $0x50] sm:$0xff]
        %v820 = vld [vmem:[#allocation5 + $0x58] sm:$0xff]
        %v821 = vld [vmem:[#allocation5 + $0x60] sm:$0xff]
        %v822 = vld [vmem:[#allocation5 + $0x68] sm:$0xff]
        %v823 = vld [vmem:[#allocation5 + $0x70] sm:$0xff]
        %v824 = vld [vmem:[#allocation5 + $0x78] sm:$0xff]
        %v825 = vld [vmem:[#allocation5 + $0x80] sm:$0xff]
        %v826 = vld [vmem:[#allocation5 + $0x88] sm:$0xff]
        %v827 = vld [vmem:[#allocation5 + $0x90] sm:$0xff]
        %v828 = vld [vmem:[#allocation5 + $0x98] sm:$0xff]
        %v829 = vld [vmem:[#allocation5 + $0xa0] sm:$0xff]
        %v830 = vld [vmem:[#allocation5 + $0xa8] sm:$0xff]
        %v831 = vld [vmem:[#allocation5 + $0xb0] sm:$0xff]
        %v832 = vld [vmem:[#allocation5 + $0xb8] sm:$0xff]
        %v833 = vld [vmem:[%s6] sm:$0x3f]
        %v835 = vlaneseq
        %v836 = vshrl.u32 %v835, 7
        %v837 = vsub.s32 0, %v836
        %v838 = vrot.slane %v833, %v837
        %v839 = vlaneseq
        %v840 = vshrl.u32 %v839, 7
        %v841 = vsub.s32 1, %v840
        %v842 = vrot.slane %v833, %v841
        %v843 = vlaneseq
        %v844 = vshrl.u32 %v843, 7
        %v845 = vsub.s32 2, %v844
        %v846 = vrot.slane %v833, %v845
        %v847 = vlaneseq
        %v848 = vshrl.u32 %v847, 7
        %v849 = vsub.s32 3, %v848
        %v850 = vrot.slane %v833, %v849
        %v851 = vlaneseq
        %v852 = vshrl.u32 %v851, 7
        %v853 = vsub.s32 4, %v852
        %v854 = vrot.slane %v833, %v853
        %v855 = vlaneseq
        %v856 = vshrl.u32 %v855, 7
        %v857 = vsub.s32 5, %v856
        %v858 = vrot.slane %v833, %v857
        %v866 = vsel %vm599, %v793, 0
        %v869 = vsel %vm599, %v794, 0
        %v872 = vsel %vm599, %v795, 0
        %v875 = vsel %vm599, %v796, 0
        %v878 = vsel %vm599, %v797, 0
        %v881 = vsel %vm599, %v798, 0
        %v884 = vsel %vm599, %v799, 0
        %v887 = vsel %vm599, %v800, 0
        %v890 = vsel %vm599, %v801, 0
        %v893 = vsel %vm599, %v802, 0
        %v896 = vsel %vm599, %v803, 0
        %v899 = vsel %vm599, %v804, 0
        %v902 = vsel %vm599, %v805, 0
        %v905 = vsel %vm599, %v806, 0
        %v908 = vsel %vm599, %v807, 0
        %v911 = vsel %vm599, %v808, 0
        %913 = vmatprep.subr.mxu0 0.0
        %914 = vmatpush1.msra.mxu0 0.0
        %915 = vmatprep.subr.mxu0 0.0
        %916 = vmatpush1.msra.mxu0 0.0
        %917 = vmatprep.subr.mxu0 0.0
        %918 = vmatpush1.msra.mxu0 0.0
        %919 = vmatprep.subr.mxu0 0.0
        %920 = vmatpush1.msra.mxu0 0.0
        %921 = vmatprep.subr.mxu0 0.0
        %922 = vmatpush1.msra.mxu0 0.0
        %923 = vmatprep.subr.mxu0 0.0
        %924 = vmatpush1.msra.mxu0 0.0
        %925 = vmatprep.subr.mxu0 0.0
        %926 = vmatpush1.msra.mxu0 0.0
        %927 = vmatprep.subr.mxu0 0.0
        %928 = vmatpush1.msra.mxu0 0.0
        %929 = vmatprep.subr.mxu0 0.0
        %930 = vmatpush1.msra.mxu0 0.0
        %931 = vmatprep.subr.mxu0 0.0
        %932 = vmatpush1.msra.mxu0 0.0
        %933 = vmatprep.subr.mxu0 0.0
        %934 = vmatpush1.msra.mxu0 0.0
        %935 = vmatprep.subr.mxu0 0.0
        %936 = vmatpush1.msra.mxu0 0.0
        %937 = vmatprep.subr.mxu0 %v828
        %938 = vmatpush1.msra.mxu0 %v827
        %939 = vmatprep.subr.mxu0 %v822
        %940 = vmatpush1.msra.mxu0 %v821
        %941 = vmatprep.subr.mxu0 %v816
        %942 = vmatpush1.msra.mxu0 %v815
        %943 = vmatprep.subr.mxu0 %v810
        %944 = vmatpush1.msra.mxu0 %v809
        %945 = vmatprep.subr.mxu0 0.0
        %946 = vmatpush2.msra.mxu0 0.0
        %947 = vmatprep.subr.mxu0 0.0
        %948 = vmatpush2.msra.mxu0 0.0
        %949 = vmatprep.subr.mxu0 0.0
        %950 = vmatpush2.msra.mxu0 0.0
        %951 = vmatprep.subr.mxu0 0.0
        %952 = vmatpush2.msra.mxu0 0.0
        %953 = vmatprep.subr.mxu0 0.0
        %954 = vmatpush2.msra.mxu0 0.0
        %955 = vmatprep.subr.mxu0 0.0
        %956 = vmatpush2.msra.mxu0 0.0
        %957 = vmatprep.subr.mxu0 0.0
        %958 = vmatpush2.msra.mxu0 0.0
        %959 = vmatprep.subr.mxu0 0.0
        %960 = vmatpush2.msra.mxu0 0.0
        %961 = vmatprep.subr.mxu0 0.0
        %962 = vmatpush2.msra.mxu0 0.0
        %963 = vmatprep.subr.mxu0 0.0
        %964 = vmatpush2.msra.mxu0 0.0
        %965 = vmatprep.subr.mxu0 0.0
        %966 = vmatpush2.msra.mxu0 0.0
        %967 = vmatprep.subr.mxu0 0.0
        %968 = vmatpush2.msra.mxu0 0.0
        %969 = vmatprep.subr.mxu0 0.0
        %970 = vmatpush2.msra.mxu0 0.0
        %971 = vmatprep.subr.mxu0 0.0
        %972 = vmatpush2.msra.mxu0 0.0
        %973 = vmatprep.subr.mxu0 0.0
        %974 = vmatpush2.msra.mxu0 0.0
        %975 = vmatprep.subr.mxu0 0.0
        %976 = vmatpush2.msra.mxu0 0.0
        %977 = vmatprep.mubr.f32.mxu0 0.0
        %978 = vmatmul.mubr.f32.gmra.mxu0 %v866
        %v979 = vpop.f32.mrf.mxu0
        %v980 = vadd.f32 %v838, %v979
        %v981 = vpop.f32.mrf.mxu0
        %v982 = vadd.f32 %v842, %v981
        %983 = vmatprep.mubr.f32.mxu0 0.0
        %984 = vmatmul.mubr.f32.gmra.mxu0 %v869
        %v985 = vpop.f32.mrf.mxu0
        %v986 = vadd.f32 %v838, %v985
        %v987 = vpop.f32.mrf.mxu0
        %v988 = vadd.f32 %v842, %v987
        %989 = vmatprep.mubr.f32.mxu0 0.0
        %990 = vmatmul.mubr.f32.gmra.mxu0 %v872
        %v991 = vpop.f32.mrf.mxu0
        %v992 = vadd.f32 %v838, %v991
        %v993 = vpop.f32.mrf.mxu0
        %v994 = vadd.f32 %v842, %v993
        %995 = vmatprep.mubr.f32.mxu0 0.0
        %996 = vmatmul.mubr.f32.gmra.mxu0 %v875
        %v997 = vpop.f32.mrf.mxu0
        %v998 = vadd.f32 %v838, %v997
        %v999 = vpop.f32.mrf.mxu0
        %v1000 = vadd.f32 %v842, %v999
        %1001 = vmatprep.mubr.f32.mxu0 0.0
        %1002 = vmatmul.mubr.f32.gmra.mxu0 %v878
        %v1003 = vpop.f32.mrf.mxu0
        %v1004 = vadd.f32 %v838, %v1003
        %v1005 = vpop.f32.mrf.mxu0
        %v1006 = vadd.f32 %v842, %v1005
        %1007 = vmatprep.mubr.f32.mxu0 0.0
        %1008 = vmatmul.mubr.f32.gmra.mxu0 %v881
        %v1009 = vpop.f32.mrf.mxu0
        %v1010 = vadd.f32 %v838, %v1009
        %v1011 = vpop.f32.mrf.mxu0
        %v1012 = vadd.f32 %v842, %v1011
        %1013 = vmatprep.mubr.f32.mxu0 0.0
        %1014 = vmatmul.mubr.f32.gmra.mxu0 %v884
        %v1015 = vpop.f32.mrf.mxu0
        %v1016 = vadd.f32 %v838, %v1015
        %v1017 = vpop.f32.mrf.mxu0
        %v1018 = vadd.f32 %v842, %v1017
        %1019 = vmatprep.mubr.f32.mxu0 0.0
        %1020 = vmatmul.mubr.f32.gmra.mxu0 %v887
        %v1021 = vpop.f32.mrf.mxu0
        %v1022 = vadd.f32 %v838, %v1021
        %v1023 = vpop.f32.mrf.mxu0
        %v1024 = vadd.f32 %v842, %v1023
        %1025 = vmatprep.mubr.f32.mxu0 0.0
        %1026 = vmatmul.mubr.f32.gmra.mxu0 %v890
        %v1027 = vpop.f32.mrf.mxu0
        %v1028 = vadd.f32 %v838, %v1027
        %v1029 = vpop.f32.mrf.mxu0
        %v1030 = vadd.f32 %v842, %v1029
        %1031 = vmatprep.mubr.f32.mxu0 0.0
        %1032 = vmatmul.mubr.f32.gmra.mxu0 %v893
        %v1033 = vpop.f32.mrf.mxu0
        %v1034 = vadd.f32 %v838, %v1033
        %v1035 = vpop.f32.mrf.mxu0
        %v1036 = vadd.f32 %v842, %v1035
        %1037 = vmatprep.mubr.f32.mxu0 0.0
        %1038 = vmatmul.mubr.f32.gmra.mxu0 %v896
        %v1039 = vpop.f32.mrf.mxu0
        %v1040 = vadd.f32 %v838, %v1039
        %v1041 = vpop.f32.mrf.mxu0
        %v1042 = vadd.f32 %v842, %v1041
        %1043 = vmatprep.mubr.f32.mxu0 0.0
        %1044 = vmatmul.mubr.f32.gmra.mxu0 %v899
        %v1045 = vpop.f32.mrf.mxu0
        %v1046 = vadd.f32 %v838, %v1045
        %v1047 = vpop.f32.mrf.mxu0
        %v1048 = vadd.f32 %v842, %v1047
        %1049 = vmatprep.mubr.f32.mxu0 0.0
        %1050 = vmatmul.mubr.f32.gmra.mxu0 %v902
        %v1051 = vpop.f32.mrf.mxu0
        %v1052 = vadd.f32 %v838, %v1051
        %v1053 = vpop.f32.mrf.mxu0
        %v1054 = vadd.f32 %v842, %v1053
        %1055 = vmatprep.mubr.f32.mxu0 0.0
        %1056 = vmatmul.mubr.f32.gmra.mxu0 %v905
        %v1057 = vpop.f32.mrf.mxu0
        %v1058 = vadd.f32 %v838, %v1057
        %v1059 = vpop.f32.mrf.mxu0
        %v1060 = vadd.f32 %v842, %v1059
        %1061 = vmatprep.mubr.f32.mxu0 0.0
        %1062 = vmatmul.mubr.f32.gmra.mxu0 %v908
        %v1063 = vpop.f32.mrf.mxu0
        %v1064 = vadd.f32 %v838, %v1063
        %v1065 = vpop.f32.mrf.mxu0
        %v1066 = vadd.f32 %v842, %v1065
        %1067 = vmatprep.mubr.f32.mxu0 0.0
        %1068 = vmatmul.mubr.f32.gmra.mxu0 %v911
        %v1069 = vpop.f32.mrf.mxu0
        %v1070 = vadd.f32 %v838, %v1069
        %v1071 = vpop.f32.mrf.mxu0
        %v1072 = vadd.f32 %v842, %v1071
        %1073 = vdwg.mxu0
        %1074 = vmatprep.subr.mxu0 0.0
        %1075 = vmatpush1.msra.mxu0 0.0
        %1076 = vmatprep.subr.mxu0 0.0
        %1077 = vmatpush1.msra.mxu0 0.0
        %1078 = vmatprep.subr.mxu0 0.0
        %1079 = vmatpush1.msra.mxu0 0.0
        %1080 = vmatprep.subr.mxu0 0.0
        %1081 = vmatpush1.msra.mxu0 0.0
        %1082 = vmatprep.subr.mxu0 0.0
        %1083 = vmatpush1.msra.mxu0 0.0
        %1084 = vmatprep.subr.mxu0 0.0
        %1085 = vmatpush1.msra.mxu0 0.0
        %1086 = vmatprep.subr.mxu0 0.0
        %1087 = vmatpush1.msra.mxu0 0.0
        %1088 = vmatprep.subr.mxu0 0.0
        %1089 = vmatpush1.msra.mxu0 0.0
        %1090 = vmatprep.subr.mxu0 0.0
        %1091 = vmatpush1.msra.mxu0 0.0
        %1092 = vmatprep.subr.mxu0 0.0
        %1093 = vmatpush1.msra.mxu0 0.0
        %1094 = vmatprep.subr.mxu0 0.0
        %1095 = vmatpush1.msra.mxu0 0.0
        %1096 = vmatprep.subr.mxu0 0.0
        %1097 = vmatpush1.msra.mxu0 0.0
        %1098 = vmatprep.subr.mxu0 %v830
        %1099 = vmatpush1.msra.mxu0 %v829
        %1100 = vmatprep.subr.mxu0 %v824
        %1101 = vmatpush1.msra.mxu0 %v823
        %1102 = vmatprep.subr.mxu0 %v818
        %1103 = vmatpush1.msra.mxu0 %v817
        %1104 = vmatprep.subr.mxu0 %v812
        %1105 = vmatpush1.msra.mxu0 %v811
        %1106 = vmatprep.subr.mxu0 0.0
        %1107 = vmatpush2.msra.mxu0 0.0
        %1108 = vmatprep.subr.mxu0 0.0
        %1109 = vmatpush2.msra.mxu0 0.0
        %1110 = vmatprep.subr.mxu0 0.0
        %1111 = vmatpush2.msra.mxu0 0.0
        %1112 = vmatprep.subr.mxu0 0.0
        %1113 = vmatpush2.msra.mxu0 0.0
        %1114 = vmatprep.subr.mxu0 0.0
        %1115 = vmatpush2.msra.mxu0 0.0
        %1116 = vmatprep.subr.mxu0 0.0
        %1117 = vmatpush2.msra.mxu0 0.0
        %1118 = vmatprep.subr.mxu0 0.0
        %1119 = vmatpush2.msra.mxu0 0.0
        %1120 = vmatprep.subr.mxu0 0.0
        %1121 = vmatpush2.msra.mxu0 0.0
        %1122 = vmatprep.subr.mxu0 0.0
        %1123 = vmatpush2.msra.mxu0 0.0
        %1124 = vmatprep.subr.mxu0 0.0
        %1125 = vmatpush2.msra.mxu0 0.0
        %1126 = vmatprep.subr.mxu0 0.0
        %1127 = vmatpush2.msra.mxu0 0.0
        %1128 = vmatprep.subr.mxu0 0.0
        %1129 = vmatpush2.msra.mxu0 0.0
        %1130 = vmatprep.subr.mxu0 0.0
        %1131 = vmatpush2.msra.mxu0 0.0
        %1132 = vmatprep.subr.mxu0 0.0
        %1133 = vmatpush2.msra.mxu0 0.0
        %1134 = vmatprep.subr.mxu0 0.0
        %1135 = vmatpush2.msra.mxu0 0.0
        %1136 = vmatprep.subr.mxu0 0.0
        %1137 = vmatpush2.msra.mxu0 0.0
        %1138 = vmatprep.mubr.f32.mxu0 0.0
        %1139 = vmatmul.mubr.f32.gmra.mxu0 %v866
        %v1140 = vpop.f32.mrf.mxu0
        %v1141 = vadd.f32 %v846, %v1140
        %v1142 = vpop.f32.mrf.mxu0
        %v1143 = vadd.f32 %v850, %v1142
        %1144 = vmatprep.mubr.f32.mxu0 0.0
        %1145 = vmatmul.mubr.f32.gmra.mxu0 %v869
        %v1146 = vpop.f32.mrf.mxu0
        %v1147 = vadd.f32 %v846, %v1146
        %v1148 = vpop.f32.mrf.mxu0
        %v1149 = vadd.f32 %v850, %v1148
        %1150 = vmatprep.mubr.f32.mxu0 0.0
        %1151 = vmatmul.mubr.f32.gmra.mxu0 %v872
        %v1152 = vpop.f32.mrf.mxu0
        %v1153 = vadd.f32 %v846, %v1152
        %v1154 = vpop.f32.mrf.mxu0
        %v1155 = vadd.f32 %v850, %v1154
        %1156 = vmatprep.mubr.f32.mxu0 0.0
        %1157 = vmatmul.mubr.f32.gmra.mxu0 %v875
        %v1158 = vpop.f32.mrf.mxu0
        %v1159 = vadd.f32 %v846, %v1158
        %v1160 = vpop.f32.mrf.mxu0
        %v1161 = vadd.f32 %v850, %v1160
        %1162 = vmatprep.mubr.f32.mxu0 0.0
        %1163 = vmatmul.mubr.f32.gmra.mxu0 %v878
        %v1164 = vpop.f32.mrf.mxu0
        %v1165 = vadd.f32 %v846, %v1164
        %v1166 = vpop.f32.mrf.mxu0
        %v1167 = vadd.f32 %v850, %v1166
        %1168 = vmatprep.mubr.f32.mxu0 0.0
        %1169 = vmatmul.mubr.f32.gmra.mxu0 %v881
        %v1170 = vpop.f32.mrf.mxu0
        %v1171 = vadd.f32 %v846, %v1170
        %v1172 = vpop.f32.mrf.mxu0
        %v1173 = vadd.f32 %v850, %v1172
        %1174 = vmatprep.mubr.f32.mxu0 0.0
        %1175 = vmatmul.mubr.f32.gmra.mxu0 %v884
        %v1176 = vpop.f32.mrf.mxu0
        %v1177 = vadd.f32 %v846, %v1176
        %v1178 = vpop.f32.mrf.mxu0
        %v1179 = vadd.f32 %v850, %v1178
        %1180 = vmatprep.mubr.f32.mxu0 0.0
        %1181 = vmatmul.mubr.f32.gmra.mxu0 %v887
        %v1182 = vpop.f32.mrf.mxu0
        %v1183 = vadd.f32 %v846, %v1182
        %v1184 = vpop.f32.mrf.mxu0
        %v1185 = vadd.f32 %v850, %v1184
        %1186 = vmatprep.mubr.f32.mxu0 0.0
        %1187 = vmatmul.mubr.f32.gmra.mxu0 %v890
        %v1188 = vpop.f32.mrf.mxu0
        %v1189 = vadd.f32 %v846, %v1188
        %v1190 = vpop.f32.mrf.mxu0
        %v1191 = vadd.f32 %v850, %v1190
        %1192 = vmatprep.mubr.f32.mxu0 0.0
        %1193 = vmatmul.mubr.f32.gmra.mxu0 %v893
        %v1194 = vpop.f32.mrf.mxu0
        %v1195 = vadd.f32 %v846, %v1194
        %v1196 = vpop.f32.mrf.mxu0
        %v1197 = vadd.f32 %v850, %v1196
        %1198 = vmatprep.mubr.f32.mxu0 0.0
        %1199 = vmatmul.mubr.f32.gmra.mxu0 %v896
        %v1200 = vpop.f32.mrf.mxu0
        %v1201 = vadd.f32 %v846, %v1200
        %v1202 = vpop.f32.mrf.mxu0
        %v1203 = vadd.f32 %v850, %v1202
        %1204 = vmatprep.mubr.f32.mxu0 0.0
        %1205 = vmatmul.mubr.f32.gmra.mxu0 %v899
        %v1206 = vpop.f32.mrf.mxu0
        %v1207 = vadd.f32 %v846, %v1206
        %v1208 = vpop.f32.mrf.mxu0
        %v1209 = vadd.f32 %v850, %v1208
        %1210 = vmatprep.mubr.f32.mxu0 0.0
        %1211 = vmatmul.mubr.f32.gmra.mxu0 %v902
        %v1212 = vpop.f32.mrf.mxu0
        %v1213 = vadd.f32 %v846, %v1212
        %v1214 = vpop.f32.mrf.mxu0
        %v1215 = vadd.f32 %v850, %v1214
        %1216 = vmatprep.mubr.f32.mxu0 0.0
        %1217 = vmatmul.mubr.f32.gmra.mxu0 %v905
        %v1218 = vpop.f32.mrf.mxu0
        %v1219 = vadd.f32 %v846, %v1218
        %v1220 = vpop.f32.mrf.mxu0
        %v1221 = vadd.f32 %v850, %v1220
        %1222 = vmatprep.mubr.f32.mxu0 0.0
        %1223 = vmatmul.mubr.f32.gmra.mxu0 %v908
        %v1224 = vpop.f32.mrf.mxu0
        %v1225 = vadd.f32 %v846, %v1224
        %v1226 = vpop.f32.mrf.mxu0
        %v1227 = vadd.f32 %v850, %v1226
        %1228 = vmatprep.mubr.f32.mxu0 0.0
        %1229 = vmatmul.mubr.f32.gmra.mxu0 %v911
        %v1230 = vpop.f32.mrf.mxu0
        %v1231 = vadd.f32 %v846, %v1230
        %v1232 = vpop.f32.mrf.mxu0
        %v1233 = vadd.f32 %v850, %v1232
        %1234 = vdwg.mxu0
        %1235 = vmatprep.subr.mxu0 0.0
        %1236 = vmatpush1.msra.mxu0 0.0
        %1237 = vmatprep.subr.mxu0 0.0
        %1238 = vmatpush1.msra.mxu0 0.0
        %1239 = vmatprep.subr.mxu0 0.0
        %1240 = vmatpush1.msra.mxu0 0.0
        %1241 = vmatprep.subr.mxu0 0.0
        %1242 = vmatpush1.msra.mxu0 0.0
        %1243 = vmatprep.subr.mxu0 0.0
        %1244 = vmatpush1.msra.mxu0 0.0
        %1245 = vmatprep.subr.mxu0 0.0
        %1246 = vmatpush1.msra.mxu0 0.0
        %1247 = vmatprep.subr.mxu0 0.0
        %1248 = vmatpush1.msra.mxu0 0.0
        %1249 = vmatprep.subr.mxu0 0.0
        %1250 = vmatpush1.msra.mxu0 0.0
        %1251 = vmatprep.subr.mxu0 0.0
        %1252 = vmatpush1.msra.mxu0 0.0
        %1253 = vmatprep.subr.mxu0 0.0
        %1254 = vmatpush1.msra.mxu0 0.0
        %1255 = vmatprep.subr.mxu0 0.0
        %1256 = vmatpush1.msra.mxu0 0.0
        %1257 = vmatprep.subr.mxu0 0.0
        %1258 = vmatpush1.msra.mxu0 0.0
        %1259 = vmatprep.subr.mxu0 %v832
        %1260 = vmatpush1.msra.mxu0 %v831
        %1261 = vmatprep.subr.mxu0 %v826
        %1262 = vmatpush1.msra.mxu0 %v825
        %1263 = vmatprep.subr.mxu0 %v820
        %1264 = vmatpush1.msra.mxu0 %v819
        %1265 = vmatprep.subr.mxu0 %v814
        %1266 = vmatpush1.msra.mxu0 %v813
        %1267 = vmatprep.subr.mxu0 0.0
        %1268 = vmatpush2.msra.mxu0 0.0
        %1269 = vmatprep.subr.mxu0 0.0
        %1270 = vmatpush2.msra.mxu0 0.0
        %1271 = vmatprep.subr.mxu0 0.0
        %1272 = vmatpush2.msra.mxu0 0.0
        %1273 = vmatprep.subr.mxu0 0.0
        %1274 = vmatpush2.msra.mxu0 0.0
        %1275 = vmatprep.subr.mxu0 0.0
        %1276 = vmatpush2.msra.mxu0 0.0
        %1277 = vmatprep.subr.mxu0 0.0
        %1278 = vmatpush2.msra.mxu0 0.0
        %1279 = vmatprep.subr.mxu0 0.0
        %1280 = vmatpush2.msra.mxu0 0.0
        %1281 = vmatprep.subr.mxu0 0.0
        %1282 = vmatpush2.msra.mxu0 0.0
        %1283 = vmatprep.subr.mxu0 0.0
        %1284 = vmatpush2.msra.mxu0 0.0
        %1285 = vmatprep.subr.mxu0 0.0
        %1286 = vmatpush2.msra.mxu0 0.0
        %1287 = vmatprep.subr.mxu0 0.0
        %1288 = vmatpush2.msra.mxu0 0.0
        %1289 = vmatprep.subr.mxu0 0.0
        %1290 = vmatpush2.msra.mxu0 0.0
        %1291 = vmatprep.subr.mxu0 0.0
        %1292 = vmatpush2.msra.mxu0 0.0
        %1293 = vmatprep.subr.mxu0 0.0
        %1294 = vmatpush2.msra.mxu0 0.0
        %1295 = vmatprep.subr.mxu0 0.0
        %1296 = vmatpush2.msra.mxu0 0.0
        %1297 = vmatprep.subr.mxu0 0.0
        %1298 = vmatpush2.msra.mxu0 0.0
        %1299 = vmatprep.mubr.f32.mxu0 0.0
        %1300 = vmatmul.mubr.f32.gmra.mxu0 %v866
        %v1301 = vpop.f32.mrf.mxu0
        %v1302 = vadd.f32 %v854, %v1301
        %v1303 = vpop.f32.mrf.mxu0
        %v1304 = vadd.f32 %v858, %v1303
        %1305 = vmatprep.mubr.f32.mxu0 0.0
        %1306 = vmatmul.mubr.f32.gmra.mxu0 %v869
        %v1307 = vpop.f32.mrf.mxu0
        %v1308 = vadd.f32 %v854, %v1307
        %v1309 = vpop.f32.mrf.mxu0
        %v1310 = vadd.f32 %v858, %v1309
        %1311 = vmatprep.mubr.f32.mxu0 0.0
        %1312 = vmatmul.mubr.f32.gmra.mxu0 %v872
        %v1313 = vpop.f32.mrf.mxu0
        %v1314 = vadd.f32 %v854, %v1313
        %v1315 = vpop.f32.mrf.mxu0
        %v1316 = vadd.f32 %v858, %v1315
        %1317 = vmatprep.mubr.f32.mxu0 0.0
        %1318 = vmatmul.mubr.f32.gmra.mxu0 %v875
        %v1319 = vpop.f32.mrf.mxu0
        %v1320 = vadd.f32 %v854, %v1319
        %v1321 = vpop.f32.mrf.mxu0
        %v1322 = vadd.f32 %v858, %v1321
        %1323 = vmatprep.mubr.f32.mxu0 0.0
        %1324 = vmatmul.mubr.f32.gmra.mxu0 %v878
        %v1325 = vpop.f32.mrf.mxu0
        %v1326 = vadd.f32 %v854, %v1325
        %v1327 = vpop.f32.mrf.mxu0
        %v1328 = vadd.f32 %v858, %v1327
        %1329 = vmatprep.mubr.f32.mxu0 0.0
        %1330 = vmatmul.mubr.f32.gmra.mxu0 %v881
        %v1331 = vpop.f32.mrf.mxu0
        %v1332 = vadd.f32 %v854, %v1331
        %v1333 = vpop.f32.mrf.mxu0
        %v1334 = vadd.f32 %v858, %v1333
        %1335 = vmatprep.mubr.f32.mxu0 0.0
        %1336 = vmatmul.mubr.f32.gmra.mxu0 %v884
        %v1337 = vpop.f32.mrf.mxu0
        %v1338 = vadd.f32 %v854, %v1337
        %v1339 = vpop.f32.mrf.mxu0
        %v1340 = vadd.f32 %v858, %v1339
        %1341 = vmatprep.mubr.f32.mxu0 0.0
        %1342 = vmatmul.mubr.f32.gmra.mxu0 %v887
        %v1343 = vpop.f32.mrf.mxu0
        %v1344 = vadd.f32 %v854, %v1343
        %v1345 = vpop.f32.mrf.mxu0
        %v1346 = vadd.f32 %v858, %v1345
        %1347 = vmatprep.mubr.f32.mxu0 0.0
        %1348 = vmatmul.mubr.f32.gmra.mxu0 %v890
        %v1349 = vpop.f32.mrf.mxu0
        %v1350 = vadd.f32 %v854, %v1349
        %v1351 = vpop.f32.mrf.mxu0
        %v1352 = vadd.f32 %v858, %v1351
        %1353 = vmatprep.mubr.f32.mxu0 0.0
        %1354 = vmatmul.mubr.f32.gmra.mxu0 %v893
        %v1355 = vpop.f32.mrf.mxu0
        %v1356 = vadd.f32 %v854, %v1355
        %v1357 = vpop.f32.mrf.mxu0
        %v1358 = vadd.f32 %v858, %v1357
        %1359 = vmatprep.mubr.f32.mxu0 0.0
        %1360 = vmatmul.mubr.f32.gmra.mxu0 %v896
        %v1361 = vpop.f32.mrf.mxu0
        %v1362 = vadd.f32 %v854, %v1361
        %v1363 = vpop.f32.mrf.mxu0
        %v1364 = vadd.f32 %v858, %v1363
        %1365 = vmatprep.mubr.f32.mxu0 0.0
        %1366 = vmatmul.mubr.f32.gmra.mxu0 %v899
        %v1367 = vpop.f32.mrf.mxu0
        %v1368 = vadd.f32 %v854, %v1367
        %v1369 = vpop.f32.mrf.mxu0
        %v1370 = vadd.f32 %v858, %v1369
        %1371 = vmatprep.mubr.f32.mxu0 0.0
        %1372 = vmatmul.mubr.f32.gmra.mxu0 %v902
        %v1373 = vpop.f32.mrf.mxu0
        %v1374 = vadd.f32 %v854, %v1373
        %v1375 = vpop.f32.mrf.mxu0
        %v1376 = vadd.f32 %v858, %v1375
        %1377 = vmatprep.mubr.f32.mxu0 0.0
        %1378 = vmatmul.mubr.f32.gmra.mxu0 %v905
        %v1379 = vpop.f32.mrf.mxu0
        %v1380 = vadd.f32 %v854, %v1379
        %v1381 = vpop.f32.mrf.mxu0
        %v1382 = vadd.f32 %v858, %v1381
        %1383 = vmatprep.mubr.f32.mxu0 0.0
        %1384 = vmatmul.mubr.f32.gmra.mxu0 %v908
        %v1385 = vpop.f32.mrf.mxu0
        %v1386 = vadd.f32 %v854, %v1385
        %v1387 = vpop.f32.mrf.mxu0
        %v1388 = vadd.f32 %v858, %v1387
        %1389 = vmatprep.mubr.f32.mxu0 0.0
        %1390 = vmatmul.mubr.f32.gmra.mxu0 %v911
        %v1391 = vpop.f32.mrf.mxu0
        %v1392 = vadd.f32 %v854, %v1391
        %v1393 = vpop.f32.mrf.mxu0
        %v1394 = vadd.f32 %v858, %v1393
        %1395 = vdwg.mxu0
        %v1396 = vxor.u32 %v980, 2147483648
        %v1397 = vxor.u32 %v982, 2147483648
        %v1398 = vxor.u32 %v1141, 2147483648
        %v1399 = vxor.u32 %v1143, 2147483648
        %v1400 = vxor.u32 %v1302, 2147483648
        %v1401 = vxor.u32 %v1304, 2147483648
        %v1402 = vxor.u32 %v986, 2147483648
        %v1403 = vxor.u32 %v988, 2147483648
        %v1404 = vxor.u32 %v1147, 2147483648
        %v1405 = vxor.u32 %v1149, 2147483648
        %v1406 = vxor.u32 %v1308, 2147483648
        %v1407 = vxor.u32 %v1310, 2147483648
        %v1408 = vxor.u32 %v992, 2147483648
        %v1409 = vxor.u32 %v994, 2147483648
        %v1410 = vxor.u32 %v1153, 2147483648
        %v1411 = vxor.u32 %v1155, 2147483648
        %v1412 = vxor.u32 %v1314, 2147483648
        %v1413 = vxor.u32 %v1316, 2147483648
        %v1414 = vxor.u32 %v998, 2147483648
        %v1415 = vxor.u32 %v1000, 2147483648
        %v1416 = vxor.u32 %v1159, 2147483648
        %v1417 = vxor.u32 %v1161, 2147483648
        %v1418 = vxor.u32 %v1320, 2147483648
        %v1419 = vxor.u32 %v1322, 2147483648
        %v1420 = vxor.u32 %v1004, 2147483648
        %v1421 = vxor.u32 %v1006, 2147483648
        %v1422 = vxor.u32 %v1165, 2147483648
        %v1423 = vxor.u32 %v1167, 2147483648
        %v1424 = vxor.u32 %v1326, 2147483648
        %v1425 = vxor.u32 %v1328, 2147483648
        %v1426 = vxor.u32 %v1010, 2147483648
        %v1427 = vxor.u32 %v1012, 2147483648
        %v1428 = vxor.u32 %v1171, 2147483648
        %v1429 = vxor.u32 %v1173, 2147483648
        %v1430 = vxor.u32 %v1332, 2147483648
        %v1431 = vxor.u32 %v1334, 2147483648
        %v1432 = vxor.u32 %v1016, 2147483648
        %v1433 = vxor.u32 %v1018, 2147483648
        %v1434 = vxor.u32 %v1177, 2147483648
        %v1435 = vxor.u32 %v1179, 2147483648
        %v1436 = vxor.u32 %v1338, 2147483648
        %v1437 = vxor.u32 %v1340, 2147483648
        %v1438 = vxor.u32 %v1022, 2147483648
        %v1439 = vxor.u32 %v1024, 2147483648
        %v1440 = vxor.u32 %v1183, 2147483648
        %v1441 = vxor.u32 %v1185, 2147483648
        %v1442 = vxor.u32 %v1344, 2147483648
        %v1443 = vxor.u32 %v1346, 2147483648
        %v1444 = vxor.u32 %v1028, 2147483648
        %v1445 = vxor.u32 %v1030, 2147483648
        %v1446 = vxor.u32 %v1189, 2147483648
        %v1447 = vxor.u32 %v1191, 2147483648
        %v1448 = vxor.u32 %v1350, 2147483648
        %v1449 = vxor.u32 %v1352, 2147483648
        %v1450 = vxor.u32 %v1034, 2147483648
        %v1451 = vxor.u32 %v1036, 2147483648
        %v1452 = vxor.u32 %v1195, 2147483648
        %v1453 = vxor.u32 %v1197, 2147483648
        %v1454 = vxor.u32 %v1356, 2147483648
        %v1455 = vxor.u32 %v1358, 2147483648
        %v1456 = vxor.u32 %v1040, 2147483648
        %v1457 = vxor.u32 %v1042, 2147483648
        %v1458 = vxor.u32 %v1201, 2147483648
        %v1459 = vxor.u32 %v1203, 2147483648
        %v1460 = vxor.u32 %v1362, 2147483648
        %v1461 = vxor.u32 %v1364, 2147483648
        %v1462 = vxor.u32 %v1046, 2147483648
        %v1463 = vxor.u32 %v1048, 2147483648
        %v1464 = vxor.u32 %v1207, 2147483648
        %v1465 = vxor.u32 %v1209, 2147483648
        %v1466 = vxor.u32 %v1368, 2147483648
        %v1467 = vxor.u32 %v1370, 2147483648
        %v1468 = vxor.u32 %v1052, 2147483648
        %v1469 = vxor.u32 %v1054, 2147483648
        %v1470 = vxor.u32 %v1213, 2147483648
        %v1471 = vxor.u32 %v1215, 2147483648
        %v1472 = vxor.u32 %v1374, 2147483648
        %v1473 = vxor.u32 %v1376, 2147483648
        %v1474 = vxor.u32 %v1058, 2147483648
        %v1475 = vxor.u32 %v1060, 2147483648
        %v1476 = vxor.u32 %v1219, 2147483648
        %v1477 = vxor.u32 %v1221, 2147483648
        %v1478 = vxor.u32 %v1380, 2147483648
        %v1479 = vxor.u32 %v1382, 2147483648
        %v1480 = vxor.u32 %v1064, 2147483648
        %v1481 = vxor.u32 %v1066, 2147483648
        %v1482 = vxor.u32 %v1225, 2147483648
        %v1483 = vxor.u32 %v1227, 2147483648
        %v1484 = vxor.u32 %v1386, 2147483648
        %v1485 = vxor.u32 %v1388, 2147483648
        %v1486 = vxor.u32 %v1070, 2147483648
        %v1487 = vxor.u32 %v1072, 2147483648
        %v1488 = vxor.u32 %v1231, 2147483648
        %v1489 = vxor.u32 %v1233, 2147483648
        %v1490 = vxor.u32 %v1392, 2147483648
        %v1491 = vxor.u32 %v1394, 2147483648
        %v1492 = vmul.f32 %v1396, 1.442695
        %v1493 = vpow.pop %v1492
        %v1494 = vmul.f32 %v1397, 1.442695
        %v1495 = vpow.pop %v1494
        %v1496 = vmul.f32 %v1398, 1.442695
        %v1497 = vpow.pop %v1496
        %v1498 = vmul.f32 %v1399, 1.442695
        %v1499 = vpow.pop %v1498
        %v1500 = vmul.f32 %v1400, 1.442695
        %v1501 = vpow.pop %v1500
        %v1502 = vmul.f32 %v1401, 1.442695
        %v1503 = vpow.pop %v1502
        %v1504 = vmul.f32 %v1402, 1.442695
        %v1505 = vpow.pop %v1504
        %v1506 = vmul.f32 %v1403, 1.442695
        %v1507 = vpow.pop %v1506
        %v1508 = vmul.f32 %v1404, 1.442695
        %v1509 = vpow.pop %v1508
        %v1510 = vmul.f32 %v1405, 1.442695
        %v1511 = vpow.pop %v1510
        %v1512 = vmul.f32 %v1406, 1.442695
        %v1513 = vpow.pop %v1512
        %v1514 = vmul.f32 %v1407, 1.442695
        %v1515 = vpow.pop %v1514
        %v1516 = vmul.f32 %v1408, 1.442695
        %v1517 = vpow.pop %v1516
        %v1518 = vmul.f32 %v1409, 1.442695
        %v1519 = vpow.pop %v1518
        %v1520 = vmul.f32 %v1410, 1.442695
        %v1521 = vpow.pop %v1520
        %v1522 = vmul.f32 %v1411, 1.442695
        %v1523 = vpow.pop %v1522
        %v1524 = vmul.f32 %v1412, 1.442695
        %v1525 = vpow.pop %v1524
        %v1526 = vmul.f32 %v1413, 1.442695
        %v1527 = vpow.pop %v1526
        %v1528 = vmul.f32 %v1414, 1.442695
        %v1529 = vpow.pop %v1528
        %v1530 = vmul.f32 %v1415, 1.442695
        %v1531 = vpow.pop %v1530
        %v1532 = vmul.f32 %v1416, 1.442695
        %v1533 = vpow.pop %v1532
        %v1534 = vmul.f32 %v1417, 1.442695
        %v1535 = vpow.pop %v1534
        %v1536 = vmul.f32 %v1418, 1.442695
        %v1537 = vpow.pop %v1536
        %v1538 = vmul.f32 %v1419, 1.442695
        %v1539 = vpow.pop %v1538
        %v1540 = vmul.f32 %v1420, 1.442695
        %v1541 = vpow.pop %v1540
        %v1542 = vmul.f32 %v1421, 1.442695
        %v1543 = vpow.pop %v1542
        %v1544 = vmul.f32 %v1422, 1.442695
        %v1545 = vpow.pop %v1544
        %v1546 = vmul.f32 %v1423, 1.442695
        %v1547 = vpow.pop %v1546
        %v1548 = vmul.f32 %v1424, 1.442695
        %v1549 = vpow.pop %v1548
        %v1550 = vmul.f32 %v1425, 1.442695
        %v1551 = vpow.pop %v1550
        %v1552 = vmul.f32 %v1426, 1.442695
        %v1553 = vpow.pop %v1552
        %v1554 = vmul.f32 %v1427, 1.442695
        %v1555 = vpow.pop %v1554
        %v1556 = vmul.f32 %v1428, 1.442695
        %v1557 = vpow.pop %v1556
        %v1558 = vmul.f32 %v1429, 1.442695
        %v1559 = vpow.pop %v1558
        %v1560 = vmul.f32 %v1430, 1.442695
        %v1561 = vpow.pop %v1560
        %v1562 = vmul.f32 %v1431, 1.442695
        %v1563 = vpow.pop %v1562
        %v1564 = vmul.f32 %v1432, 1.442695
        %v1565 = vpow.pop %v1564
        %v1566 = vmul.f32 %v1433, 1.442695
        %v1567 = vpow.pop %v1566
        %v1568 = vmul.f32 %v1434, 1.442695
        %v1569 = vpow.pop %v1568
        %v1570 = vmul.f32 %v1435, 1.442695
        %v1571 = vpow.pop %v1570
        %v1572 = vmul.f32 %v1436, 1.442695
        %v1573 = vpow.pop %v1572
        %v1574 = vmul.f32 %v1437, 1.442695
        %v1575 = vpow.pop %v1574
        %v1576 = vmul.f32 %v1438, 1.442695
        %v1577 = vpow.pop %v1576
        %v1578 = vmul.f32 %v1439, 1.442695
        %v1579 = vpow.pop %v1578
        %v1580 = vmul.f32 %v1440, 1.442695
        %v1581 = vpow.pop %v1580
        %v1582 = vmul.f32 %v1441, 1.442695
        %v1583 = vpow.pop %v1582
        %v1584 = vmul.f32 %v1442, 1.442695
        %v1585 = vpow.pop %v1584
        %v1586 = vmul.f32 %v1443, 1.442695
        %v1587 = vpow.pop %v1586
        %v1588 = vmul.f32 %v1444, 1.442695
        %v1589 = vpow.pop %v1588
        %v1590 = vmul.f32 %v1445, 1.442695
        %v1591 = vpow.pop %v1590
        %v1592 = vmul.f32 %v1446, 1.442695
        %v1593 = vpow.pop %v1592
        %v1594 = vmul.f32 %v1447, 1.442695
        %v1595 = vpow.pop %v1594
        %v1596 = vmul.f32 %v1448, 1.442695
        %v1597 = vpow.pop %v1596
        %v1598 = vmul.f32 %v1449, 1.442695
        %v1599 = vpow.pop %v1598
        %v1600 = vmul.f32 %v1450, 1.442695
        %v1601 = vpow.pop %v1600
        %v1602 = vmul.f32 %v1451, 1.442695
        %v1603 = vpow.pop %v1602
        %v1604 = vmul.f32 %v1452, 1.442695
        %v1605 = vpow.pop %v1604
        %v1606 = vmul.f32 %v1453, 1.442695
        %v1607 = vpow.pop %v1606
        %v1608 = vmul.f32 %v1454, 1.442695
        %v1609 = vpow.pop %v1608
        %v1610 = vmul.f32 %v1455, 1.442695
        %v1611 = vpow.pop %v1610
        %v1612 = vmul.f32 %v1456, 1.442695
        %v1613 = vpow.pop %v1612
        %v1614 = vmul.f32 %v1457, 1.442695
        %v1615 = vpow.pop %v1614
        %v1616 = vmul.f32 %v1458, 1.442695
        %v1617 = vpow.pop %v1616
        %v1618 = vmul.f32 %v1459, 1.442695
        %v1619 = vpow.pop %v1618
        %v1620 = vmul.f32 %v1460, 1.442695
        %v1621 = vpow.pop %v1620
        %v1622 = vmul.f32 %v1461, 1.442695
        %v1623 = vpow.pop %v1622
        %v1624 = vmul.f32 %v1462, 1.442695
        %v1625 = vpow.pop %v1624
        %v1626 = vmul.f32 %v1463, 1.442695
        %v1627 = vpow.pop %v1626
        %v1628 = vmul.f32 %v1464, 1.442695
        %v1629 = vpow.pop %v1628
        %v1630 = vmul.f32 %v1465, 1.442695
        %v1631 = vpow.pop %v1630
        %v1632 = vmul.f32 %v1466, 1.442695
        %v1633 = vpow.pop %v1632
        %v1634 = vmul.f32 %v1467, 1.442695
        %v1635 = vpow.pop %v1634
        %v1636 = vmul.f32 %v1468, 1.442695
        %v1637 = vpow.pop %v1636
        %v1638 = vmul.f32 %v1469, 1.442695
        %v1639 = vpow.pop %v1638
        %v1640 = vmul.f32 %v1470, 1.442695
        %v1641 = vpow.pop %v1640
        %v1642 = vmul.f32 %v1471, 1.442695
        %v1643 = vpow.pop %v1642
        %v1644 = vmul.f32 %v1472, 1.442695
        %v1645 = vpow.pop %v1644
        %v1646 = vmul.f32 %v1473, 1.442695
        %v1647 = vpow.pop %v1646
        %v1648 = vmul.f32 %v1474, 1.442695
        %v1649 = vpow.pop %v1648
        %v1650 = vmul.f32 %v1475, 1.442695
        %v1651 = vpow.pop %v1650
        %v1652 = vmul.f32 %v1476, 1.442695
        %v1653 = vpow.pop %v1652
        %v1654 = vmul.f32 %v1477, 1.442695
        %v1655 = vpow.pop %v1654
        %v1656 = vmul.f32 %v1478, 1.442695
        %v1657 = vpow.pop %v1656
        %v1658 = vmul.f32 %v1479, 1.442695
        %v1659 = vpow.pop %v1658
        %v1660 = vmul.f32 %v1480, 1.442695
        %v1661 = vpow.pop %v1660
        %v1662 = vmul.f32 %v1481, 1.442695
        %v1663 = vpow.pop %v1662
        %v1664 = vmul.f32 %v1482, 1.442695
        %v1665 = vpow.pop %v1664
        %v1666 = vmul.f32 %v1483, 1.442695
        %v1667 = vpow.pop %v1666
        %v1668 = vmul.f32 %v1484, 1.442695
        %v1669 = vpow.pop %v1668
        %v1670 = vmul.f32 %v1485, 1.442695
        %v1671 = vpow.pop %v1670
        %v1672 = vmul.f32 %v1486, 1.442695
        %v1673 = vpow.pop %v1672
        %v1674 = vmul.f32 %v1487, 1.442695
        %v1675 = vpow.pop %v1674
        %v1676 = vmul.f32 %v1488, 1.442695
        %v1677 = vpow.pop %v1676
        %v1678 = vmul.f32 %v1489, 1.442695
        %v1679 = vpow.pop %v1678
        %v1680 = vmul.f32 %v1490, 1.442695
        %v1681 = vpow.pop %v1680
        %v1682 = vmul.f32 %v1491, 1.442695
        %v1683 = vpow.pop %v1682
        %v1684 = vadd.f32 %v1493, 1.0
        %v1685 = vadd.f32 %v1495, 1.0
        %v1686 = vadd.f32 %v1497, 1.0
        %v1687 = vadd.f32 %v1499, 1.0
        %v1688 = vadd.f32 %v1501, 1.0
        %v1689 = vadd.f32 %v1503, 1.0
        %v1690 = vadd.f32 %v1505, 1.0
        %v1691 = vadd.f32 %v1507, 1.0
        %v1692 = vadd.f32 %v1509, 1.0
        %v1693 = vadd.f32 %v1511, 1.0
        %v1694 = vadd.f32 %v1513, 1.0
        %v1695 = vadd.f32 %v1515, 1.0
        %v1696 = vadd.f32 %v1517, 1.0
        %v1697 = vadd.f32 %v1519, 1.0
        %v1698 = vadd.f32 %v1521, 1.0
        %v1699 = vadd.f32 %v1523, 1.0
        %v1700 = vadd.f32 %v1525, 1.0
        %v1701 = vadd.f32 %v1527, 1.0
        %v1702 = vadd.f32 %v1529, 1.0
        %v1703 = vadd.f32 %v1531, 1.0
        %v1704 = vadd.f32 %v1533, 1.0
        %v1705 = vadd.f32 %v1535, 1.0
        %v1706 = vadd.f32 %v1537, 1.0
        %v1707 = vadd.f32 %v1539, 1.0
        %v1708 = vadd.f32 %v1541, 1.0
        %v1709 = vadd.f32 %v1543, 1.0
        %v1710 = vadd.f32 %v1545, 1.0
        %v1711 = vadd.f32 %v1547, 1.0
        %v1712 = vadd.f32 %v1549, 1.0
        %v1713 = vadd.f32 %v1551, 1.0
        %v1714 = vadd.f32 %v1553, 1.0
        %v1715 = vadd.f32 %v1555, 1.0
        %v1716 = vadd.f32 %v1557, 1.0
        %v1717 = vadd.f32 %v1559, 1.0
        %v1718 = vadd.f32 %v1561, 1.0
        %v1719 = vadd.f32 %v1563, 1.0
        %v1720 = vadd.f32 %v1565, 1.0
        %v1721 = vadd.f32 %v1567, 1.0
        %v1722 = vadd.f32 %v1569, 1.0
        %v1723 = vadd.f32 %v1571, 1.0
        %v1724 = vadd.f32 %v1573, 1.0
        %v1725 = vadd.f32 %v1575, 1.0
        %v1726 = vadd.f32 %v1577, 1.0
        %v1727 = vadd.f32 %v1579, 1.0
        %v1728 = vadd.f32 %v1581, 1.0
        %v1729 = vadd.f32 %v1583, 1.0
        %v1730 = vadd.f32 %v1585, 1.0
        %v1731 = vadd.f32 %v1587, 1.0
        %v1732 = vadd.f32 %v1589, 1.0
        %v1733 = vadd.f32 %v1591, 1.0
        %v1734 = vadd.f32 %v1593, 1.0
        %v1735 = vadd.f32 %v1595, 1.0
        %v1736 = vadd.f32 %v1597, 1.0
        %v1737 = vadd.f32 %v1599, 1.0
        %v1738 = vadd.f32 %v1601, 1.0
        %v1739 = vadd.f32 %v1603, 1.0
        %v1740 = vadd.f32 %v1605, 1.0
        %v1741 = vadd.f32 %v1607, 1.0
        %v1742 = vadd.f32 %v1609, 1.0
        %v1743 = vadd.f32 %v1611, 1.0
        %v1744 = vadd.f32 %v1613, 1.0
        %v1745 = vadd.f32 %v1615, 1.0
        %v1746 = vadd.f32 %v1617, 1.0
        %v1747 = vadd.f32 %v1619, 1.0
        %v1748 = vadd.f32 %v1621, 1.0
        %v1749 = vadd.f32 %v1623, 1.0
        %v1750 = vadd.f32 %v1625, 1.0
        %v1751 = vadd.f32 %v1627, 1.0
        %v1752 = vadd.f32 %v1629, 1.0
        %v1753 = vadd.f32 %v1631, 1.0
        %v1754 = vadd.f32 %v1633, 1.0
        %v1755 = vadd.f32 %v1635, 1.0
        %v1756 = vadd.f32 %v1637, 1.0
        %v1757 = vadd.f32 %v1639, 1.0
        %v1758 = vadd.f32 %v1641, 1.0
        %v1759 = vadd.f32 %v1643, 1.0
        %v1760 = vadd.f32 %v1645, 1.0
        %v1761 = vadd.f32 %v1647, 1.0
        %v1762 = vadd.f32 %v1649, 1.0
        %v1763 = vadd.f32 %v1651, 1.0
        %v1764 = vadd.f32 %v1653, 1.0
        %v1765 = vadd.f32 %v1655, 1.0
        %v1766 = vadd.f32 %v1657, 1.0
        %v1767 = vadd.f32 %v1659, 1.0
        %v1768 = vadd.f32 %v1661, 1.0
        %v1769 = vadd.f32 %v1663, 1.0
        %v1770 = vadd.f32 %v1665, 1.0
        %v1771 = vadd.f32 %v1667, 1.0
        %v1772 = vadd.f32 %v1669, 1.0
        %v1773 = vadd.f32 %v1671, 1.0
        %v1774 = vadd.f32 %v1673, 1.0
        %v1775 = vadd.f32 %v1675, 1.0
        %v1776 = vadd.f32 %v1677, 1.0
        %v1777 = vadd.f32 %v1679, 1.0
        %v1778 = vadd.f32 %v1681, 1.0
        %v1779 = vadd.f32 %v1683, 1.0
        %v1780 = vrcp.pop %v1684
        %v1781 = vmul.f32 1.0, %v1780
        %v1782 = vrcp.pop %v1685
        %v1783 = vmul.f32 1.0, %v1782
        %v1784 = vrcp.pop %v1686
        %v1785 = vmul.f32 1.0, %v1784
        %v1786 = vrcp.pop %v1687
        %v1787 = vmul.f32 1.0, %v1786
        %v1788 = vrcp.pop %v1688
        %v1789 = vmul.f32 1.0, %v1788
        %v1790 = vrcp.pop %v1689
        %v1791 = vmul.f32 1.0, %v1790
        %v1792 = vrcp.pop %v1690
        %v1793 = vmul.f32 1.0, %v1792
        %v1794 = vrcp.pop %v1691
        %v1795 = vmul.f32 1.0, %v1794
        %v1796 = vrcp.pop %v1692
        %v1797 = vmul.f32 1.0, %v1796
        %v1798 = vrcp.pop %v1693
        %v1799 = vmul.f32 1.0, %v1798
        %v1800 = vrcp.pop %v1694
        %v1801 = vmul.f32 1.0, %v1800
        %v1802 = vrcp.pop %v1695
        %v1803 = vmul.f32 1.0, %v1802
        %v1804 = vrcp.pop %v1696
        %v1805 = vmul.f32 1.0, %v1804
        %v1806 = vrcp.pop %v1697
        %v1807 = vmul.f32 1.0, %v1806
        %v1808 = vrcp.pop %v1698
        %v1809 = vmul.f32 1.0, %v1808
        %v1810 = vrcp.pop %v1699
        %v1811 = vmul.f32 1.0, %v1810
        %v1812 = vrcp.pop %v1700
        %v1813 = vmul.f32 1.0, %v1812
        %v1814 = vrcp.pop %v1701
        %v1815 = vmul.f32 1.0, %v1814
        %v1816 = vrcp.pop %v1702
        %v1817 = vmul.f32 1.0, %v1816
        %v1818 = vrcp.pop %v1703
        %v1819 = vmul.f32 1.0, %v1818
        %v1820 = vrcp.pop %v1704
        %v1821 = vmul.f32 1.0, %v1820
        %v1822 = vrcp.pop %v1705
        %v1823 = vmul.f32 1.0, %v1822
        %v1824 = vrcp.pop %v1706
        %v1825 = vmul.f32 1.0, %v1824
        %v1826 = vrcp.pop %v1707
        %v1827 = vmul.f32 1.0, %v1826
        %v1828 = vrcp.pop %v1708
        %v1829 = vmul.f32 1.0, %v1828
        %v1830 = vrcp.pop %v1709
        %v1831 = vmul.f32 1.0, %v1830
        %v1832 = vrcp.pop %v1710
        %v1833 = vmul.f32 1.0, %v1832
        %v1834 = vrcp.pop %v1711
        %v1835 = vmul.f32 1.0, %v1834
        %v1836 = vrcp.pop %v1712
        %v1837 = vmul.f32 1.0, %v1836
        %v1838 = vrcp.pop %v1713
        %v1839 = vmul.f32 1.0, %v1838
        %v1840 = vrcp.pop %v1714
        %v1841 = vmul.f32 1.0, %v1840
        %v1842 = vrcp.pop %v1715
        %v1843 = vmul.f32 1.0, %v1842
        %v1844 = vrcp.pop %v1716
        %v1845 = vmul.f32 1.0, %v1844
        %v1846 = vrcp.pop %v1717
        %v1847 = vmul.f32 1.0, %v1846
        %v1848 = vrcp.pop %v1718
        %v1849 = vmul.f32 1.0, %v1848
        %v1850 = vrcp.pop %v1719
        %v1851 = vmul.f32 1.0, %v1850
        %v1852 = vrcp.pop %v1720
        %v1853 = vmul.f32 1.0, %v1852
        %v1854 = vrcp.pop %v1721
        %v1855 = vmul.f32 1.0, %v1854
        %v1856 = vrcp.pop %v1722
        %v1857 = vmul.f32 1.0, %v1856
        %v1858 = vrcp.pop %v1723
        %v1859 = vmul.f32 1.0, %v1858
        %v1860 = vrcp.pop %v1724
        %v1861 = vmul.f32 1.0, %v1860
        %v1862 = vrcp.pop %v1725
        %v1863 = vmul.f32 1.0, %v1862
        %v1864 = vrcp.pop %v1726
        %v1865 = vmul.f32 1.0, %v1864
        %v1866 = vrcp.pop %v1727
        %v1867 = vmul.f32 1.0, %v1866
        %v1868 = vrcp.pop %v1728
        %v1869 = vmul.f32 1.0, %v1868
        %v1870 = vrcp.pop %v1729
        %v1871 = vmul.f32 1.0, %v1870
        %v1872 = vrcp.pop %v1730
        %v1873 = vmul.f32 1.0, %v1872
        %v1874 = vrcp.pop %v1731
        %v1875 = vmul.f32 1.0, %v1874
        %v1876 = vrcp.pop %v1732
        %v1877 = vmul.f32 1.0, %v1876
        %v1878 = vrcp.pop %v1733
        %v1879 = vmul.f32 1.0, %v1878
        %v1880 = vrcp.pop %v1734
        %v1881 = vmul.f32 1.0, %v1880
        %v1882 = vrcp.pop %v1735
        %v1883 = vmul.f32 1.0, %v1882
        %v1884 = vrcp.pop %v1736
        %v1885 = vmul.f32 1.0, %v1884
        %v1886 = vrcp.pop %v1737
        %v1887 = vmul.f32 1.0, %v1886
        %v1888 = vrcp.pop %v1738
        %v1889 = vmul.f32 1.0, %v1888
        %v1890 = vrcp.pop %v1739
        %v1891 = vmul.f32 1.0, %v1890
        %v1892 = vrcp.pop %v1740
        %v1893 = vmul.f32 1.0, %v1892
        %v1894 = vrcp.pop %v1741
        %v1895 = vmul.f32 1.0, %v1894
        %v1896 = vrcp.pop %v1742
        %v1897 = vmul.f32 1.0, %v1896
        %v1898 = vrcp.pop %v1743
        %v1899 = vmul.f32 1.0, %v1898
        %v1900 = vrcp.pop %v1744
        %v1901 = vmul.f32 1.0, %v1900
        %v1902 = vrcp.pop %v1745
        %v1903 = vmul.f32 1.0, %v1902
        %v1904 = vrcp.pop %v1746
        %v1905 = vmul.f32 1.0, %v1904
        %v1906 = vrcp.pop %v1747
        %v1907 = vmul.f32 1.0, %v1906
        %v1908 = vrcp.pop %v1748
        %v1909 = vmul.f32 1.0, %v1908
        %v1910 = vrcp.pop %v1749
        %v1911 = vmul.f32 1.0, %v1910
        %v1912 = vrcp.pop %v1750
        %v1913 = vmul.f32 1.0, %v1912
        %v1914 = vrcp.pop %v1751
        %v1915 = vmul.f32 1.0, %v1914
        %v1916 = vrcp.pop %v1752
        %v1917 = vmul.f32 1.0, %v1916
        %v1918 = vrcp.pop %v1753
        %v1919 = vmul.f32 1.0, %v1918
        %v1920 = vrcp.pop %v1754
        %v1921 = vmul.f32 1.0, %v1920
        %v1922 = vrcp.pop %v1755
        %v1923 = vmul.f32 1.0, %v1922
        %v1924 = vrcp.pop %v1756
        %v1925 = vmul.f32 1.0, %v1924
        %v1926 = vrcp.pop %v1757
        %v1927 = vmul.f32 1.0, %v1926
        %v1928 = vrcp.pop %v1758
        %v1929 = vmul.f32 1.0, %v1928
        %v1930 = vrcp.pop %v1759
        %v1931 = vmul.f32 1.0, %v1930
        %v1932 = vrcp.pop %v1760
        %v1933 = vmul.f32 1.0, %v1932
        %v1934 = vrcp.pop %v1761
        %v1935 = vmul.f32 1.0, %v1934
        %v1936 = vrcp.pop %v1762
        %v1937 = vmul.f32 1.0, %v1936
        %v1938 = vrcp.pop %v1763
        %v1939 = vmul.f32 1.0, %v1938
        %v1940 = vrcp.pop %v1764
        %v1941 = vmul.f32 1.0, %v1940
        %v1942 = vrcp.pop %v1765
        %v1943 = vmul.f32 1.0, %v1942
        %v1944 = vrcp.pop %v1766
        %v1945 = vmul.f32 1.0, %v1944
        %v1946 = vrcp.pop %v1767
        %v1947 = vmul.f32 1.0, %v1946
        %v1948 = vrcp.pop %v1768
        %v1949 = vmul.f32 1.0, %v1948
        %v1950 = vrcp.pop %v1769
        %v1951 = vmul.f32 1.0, %v1950
        %v1952 = vrcp.pop %v1770
        %v1953 = vmul.f32 1.0, %v1952
        %v1954 = vrcp.pop %v1771
        %v1955 = vmul.f32 1.0, %v1954
        %v1956 = vrcp.pop %v1772
        %v1957 = vmul.f32 1.0, %v1956
        %v1958 = vrcp.pop %v1773
        %v1959 = vmul.f32 1.0, %v1958
        %v1960 = vrcp.pop %v1774
        %v1961 = vmul.f32 1.0, %v1960
        %v1962 = vrcp.pop %v1775
        %v1963 = vmul.f32 1.0, %v1962
        %v1964 = vrcp.pop %v1776
        %v1965 = vmul.f32 1.0, %v1964
        %v1966 = vrcp.pop %v1777
        %v1967 = vmul.f32 1.0, %v1966
        %v1968 = vrcp.pop %v1778
        %v1969 = vmul.f32 1.0, %v1968
        %v1970 = vrcp.pop %v1779
        %v1971 = vmul.f32 1.0, %v1970
        %v1972 = vmul.f32 %v388, 2.0
        %v1973 = vmul.f32 %v389, 2.0
        %v1974 = vmul.f32 %v390, 2.0
        %v1975 = vmul.f32 %v391, 2.0
        %v1976 = vmul.f32 %v392, 2.0
        %v1977 = vmul.f32 %v393, 2.0
        %v1978 = vmul.f32 %v394, 2.0
        %v1979 = vmul.f32 %v395, 2.0
        %v1980 = vmul.f32 %v396, 2.0
        %v1981 = vmul.f32 %v397, 2.0
        %v1982 = vmul.f32 %v398, 2.0
        %v1983 = vmul.f32 %v399, 2.0
        %v1984 = vmul.f32 %v400, 2.0
        %v1985 = vmul.f32 %v401, 2.0
        %v1986 = vmul.f32 %v402, 2.0
        %v1987 = vmul.f32 %v403, 2.0
        %v1988 = vmul.f32 %v1972, %v1781
        %v1989 = vmul.f32 %v1973, %v1793
        %v1990 = vmul.f32 %v1974, %v1805
        %v1991 = vmul.f32 %v1975, %v1817
        %v1992 = vmul.f32 %v1976, %v1829
        %v1993 = vmul.f32 %v1977, %v1841
        %v1994 = vmul.f32 %v1978, %v1853
        %v1995 = vmul.f32 %v1979, %v1865
        %v1996 = vmul.f32 %v1980, %v1877
        %v1997 = vmul.f32 %v1981, %v1889
        %v1998 = vmul.f32 %v1982, %v1901
        %v1999 = vmul.f32 %v1983, %v1913
        %v2000 = vmul.f32 %v1984, %v1925
        %v2001 = vmul.f32 %v1985, %v1937
        %v2002 = vmul.f32 %v1986, %v1949
        %v2003 = vmul.f32 %v1987, %v1961
        %v2004 = vmul.f32 %v1988, %v1787
        %v2005 = vmul.f32 %v1989, %v1799
        %v2006 = vmul.f32 %v1990, %v1811
        %v2007 = vmul.f32 %v1991, %v1823
        %v2008 = vmul.f32 %v1992, %v1835
        %v2009 = vmul.f32 %v1993, %v1847
        %v2010 = vmul.f32 %v1994, %v1859
        %v2011 = vmul.f32 %v1995, %v1871
        %v2012 = vmul.f32 %v1996, %v1883
        %v2013 = vmul.f32 %v1997, %v1895
        %v2014 = vmul.f32 %v1998, %v1907
        %v2015 = vmul.f32 %v1999, %v1919
        %v2016 = vmul.f32 %v2000, %v1931
        %v2017 = vmul.f32 %v2001, %v1943
        %v2018 = vmul.f32 %v2002, %v1955
        %v2019 = vmul.f32 %v2003, %v1967
        %2020 = vst [vmem:[%s369] sm:$0xff] %v2004
        %2021 = vst [vmem:[%s369 + $0x8] sm:$0xff] %v2005
        %2022 = vst [vmem:[%s369 + $0x10] sm:$0xff] %v2006
        %2023 = vst [vmem:[%s369 + $0x18] sm:$0xff] %v2007
        %2024 = vst [vmem:[%s369 + $0x20] sm:$0xff] %v2008
        %2025 = vst [vmem:[%s369 + $0x28] sm:$0xff] %v2009
        %2026 = vst [vmem:[%s369 + $0x30] sm:$0xff] %v2010
        %2027 = vst [vmem:[%s369 + $0x38] sm:$0xff] %v2011
        %2028 = vst [vmem:[%s369 + $0x40] sm:$0xff] %v2012
        %2029 = vst [vmem:[%s369 + $0x48] sm:$0xff] %v2013
        %2030 = vst [vmem:[%s369 + $0x50] sm:$0xff] %v2014
        %2031 = vst [vmem:[%s369 + $0x58] sm:$0xff] %v2015
        %2032 = vst [vmem:[%s369 + $0x60] sm:$0xff] %v2016
        %2033 = vst [vmem:[%s369 + $0x68] sm:$0xff] %v2017
        %2034 = vst [vmem:[%s369 + $0x70] sm:$0xff] %v2018
        %2035 = vst [vmem:[%s369 + $0x78] sm:$0xff] %v2019
        %v2036 = vmul.f32 %v1972, %v1783
        %v2037 = vmul.f32 %v1973, %v1795
        %v2038 = vmul.f32 %v1974, %v1807
        %v2039 = vmul.f32 %v1975, %v1819
        %v2040 = vmul.f32 %v1976, %v1831
        %v2041 = vmul.f32 %v1977, %v1843
        %v2042 = vmul.f32 %v1978, %v1855
        %v2043 = vmul.f32 %v1979, %v1867
        %v2044 = vmul.f32 %v1980, %v1879
        %v2045 = vmul.f32 %v1981, %v1891
        %v2046 = vmul.f32 %v1982, %v1903
        %v2047 = vmul.f32 %v1983, %v1915
        %v2048 = vmul.f32 %v1984, %v1927
        %v2049 = vmul.f32 %v1985, %v1939
        %v2050 = vmul.f32 %v1986, %v1951
        %v2051 = vmul.f32 %v1987, %v1963
        %v2052 = vmul.f32 %v2036, %v1789
        %v2053 = vmul.f32 %v2037, %v1801
        %v2054 = vmul.f32 %v2038, %v1813
        %v2055 = vmul.f32 %v2039, %v1825
        %v2056 = vmul.f32 %v2040, %v1837
        %v2057 = vmul.f32 %v2041, %v1849
        %v2058 = vmul.f32 %v2042, %v1861
        %v2059 = vmul.f32 %v2043, %v1873
        %v2060 = vmul.f32 %v2044, %v1885
        %v2061 = vmul.f32 %v2045, %v1897
        %v2062 = vmul.f32 %v2046, %v1909
        %v2063 = vmul.f32 %v2047, %v1921
        %v2064 = vmul.f32 %v2048, %v1933
        %v2065 = vmul.f32 %v2049, %v1945
        %v2066 = vmul.f32 %v2050, %v1957
        %v2067 = vmul.f32 %v2051, %v1969
        %2068 = vst [vmem:[%s376] sm:$0xff] %v2052
        %2069 = vst [vmem:[%s376 + $0x8] sm:$0xff] %v2053
        %2070 = vst [vmem:[%s376 + $0x10] sm:$0xff] %v2054
        %2071 = vst [vmem:[%s376 + $0x18] sm:$0xff] %v2055
        %2072 = vst [vmem:[%s376 + $0x20] sm:$0xff] %v2056
        %2073 = vst [vmem:[%s376 + $0x28] sm:$0xff] %v2057
        %2074 = vst [vmem:[%s376 + $0x30] sm:$0xff] %v2058
        %2075 = vst [vmem:[%s376 + $0x38] sm:$0xff] %v2059
        %2076 = vst [vmem:[%s376 + $0x40] sm:$0xff] %v2060
        %2077 = vst [vmem:[%s376 + $0x48] sm:$0xff] %v2061
        %2078 = vst [vmem:[%s376 + $0x50] sm:$0xff] %v2062
        %2079 = vst [vmem:[%s376 + $0x58] sm:$0xff] %v2063
        %2080 = vst [vmem:[%s376 + $0x60] sm:$0xff] %v2064
        %2081 = vst [vmem:[%s376 + $0x68] sm:$0xff] %v2065
        %2082 = vst [vmem:[%s376 + $0x70] sm:$0xff] %v2066
        %2083 = vst [vmem:[%s376 + $0x78] sm:$0xff] %v2067
        %v2084 = vmul.f32 %v1972, %v1785
        %v2085 = vmul.f32 %v1973, %v1797
        %v2086 = vmul.f32 %v1974, %v1809
        %v2087 = vmul.f32 %v1975, %v1821
        %v2088 = vmul.f32 %v1976, %v1833
        %v2089 = vmul.f32 %v1977, %v1845
        %v2090 = vmul.f32 %v1978, %v1857
        %v2091 = vmul.f32 %v1979, %v1869
        %v2092 = vmul.f32 %v1980, %v1881
        %v2093 = vmul.f32 %v1981, %v1893
        %v2094 = vmul.f32 %v1982, %v1905
        %v2095 = vmul.f32 %v1983, %v1917
        %v2096 = vmul.f32 %v1984, %v1929
        %v2097 = vmul.f32 %v1985, %v1941
        %v2098 = vmul.f32 %v1986, %v1953
        %v2099 = vmul.f32 %v1987, %v1965
        %v2100 = vmul.f32 %v2084, %v1791
        %v2101 = vmul.f32 %v2085, %v1803
        %v2102 = vmul.f32 %v2086, %v1815
        %v2103 = vmul.f32 %v2087, %v1827
        %v2104 = vmul.f32 %v2088, %v1839
        %v2105 = vmul.f32 %v2089, %v1851
        %v2106 = vmul.f32 %v2090, %v1863
        %v2107 = vmul.f32 %v2091, %v1875
        %v2108 = vmul.f32 %v2092, %v1887
        %v2109 = vmul.f32 %v2093, %v1899
        %v2110 = vmul.f32 %v2094, %v1911
        %v2111 = vmul.f32 %v2095, %v1923
        %v2112 = vmul.f32 %v2096, %v1935
        %v2113 = vmul.f32 %v2097, %v1947
        %v2114 = vmul.f32 %v2098, %v1959
        %v2115 = vmul.f32 %v2099, %v1971
        %2116 = vst [vmem:[%s383] sm:$0xff] %v2100
        %2117 = vst [vmem:[%s383 + $0x8] sm:$0xff] %v2101
        %2118 = vst [vmem:[%s383 + $0x10] sm:$0xff] %v2102
        %2119 = vst [vmem:[%s383 + $0x18] sm:$0xff] %v2103
        %2120 = vst [vmem:[%s383 + $0x20] sm:$0xff] %v2104
        %2121 = vst [vmem:[%s383 + $0x28] sm:$0xff] %v2105
        %2122 = vst [vmem:[%s383 + $0x30] sm:$0xff] %v2106
        %2123 = vst [vmem:[%s383 + $0x38] sm:$0xff] %v2107
        %2124 = vst [vmem:[%s383 + $0x40] sm:$0xff] %v2108
        %2125 = vst [vmem:[%s383 + $0x48] sm:$0xff] %v2109
        %2126 = vst [vmem:[%s383 + $0x50] sm:$0xff] %v2110
        %2127 = vst [vmem:[%s383 + $0x58] sm:$0xff] %v2111
        %2128 = vst [vmem:[%s383 + $0x60] sm:$0xff] %v2112
        %2129 = vst [vmem:[%s383 + $0x68] sm:$0xff] %v2113
        %2130 = vst [vmem:[%s383 + $0x70] sm:$0xff] %v2114
        %2131 = vst [vmem:[%s383 + $0x78] sm:$0xff] %v2115
        %s2132 = sand.u32 %s191, 1
        %s2133 = scalar_lea.sflag [#allocation4], %s2132
        %s2134 = sand.u32 %s191, 1
        %s2135 = smul.addr %s2134, 128
        %s2136 = scalar_lea.vmem [#allocation7], %s2135
        %s2137 = sand.u32 %s31, 1
        %s2138 = scalar_lea.sflag [#allocation9], %s2137
        %s2139 = sand.u32 %s217, 1
        %s2140 = smul.addr %s2139, 128
        %s2141 = scalar_lea.vmem [#allocation8], %s2140
        %s2142 = sand.u32 %s31, 1
        %s2143 = scalar_lea.sflag [#allocation9], %s2142
        %s2144 = sand.u32 %s243, 1
        %s2145 = smul.addr %s2144, 128
        %s2146 = scalar_lea.vmem [#allocation10], %s2145
        // Predicated region
        $region57: #{tpu_custom_call.1} parent=47 // pred_check
          %p2147 = pneg %p201
        $region58: #{tpu_custom_call.1} parent=47 // pred_check_branch
          %2149 = sbr.rel (%p2147) target = $region60
        $region59: #{tpu_custom_call.1} parent=47 // pred_region
          %s2150 = smul.u32 16, %s31
          %s2152 = ssub.s32 2048, 2048
          %2153 = vsyncadd %s2133, %s2152
          %s2154 = smul.addr %s2150, 128
          %s2155 = scalar_lea.hbm %s7, %s2154
          %s2156 = sshll.u32 %s2136, 4
          %s2157 = int_to_ptr.vmem [resolvable:$true] %s2156
          %2162 = dma.vmem_to_hbm [thread:$0]  %s2157, 2048, %s2155, %s2133, 128, 128, 8
        $region60: #{tpu_custom_call.1} parent=47 // pred_fallthru
          _
        // Predicated region
        $region61: #{tpu_custom_call.1} parent=47 // pred_check
          %p2163 = pneg %p227
        $region62: #{tpu_custom_call.1} parent=47 // pred_check_branch
          %2165 = sbr.rel (%p2163) target = $region64
        $region63: #{tpu_custom_call.1} parent=47 // pred_region
          %s2166 = smul.u32 16, %s31
          %s2168 = ssub.s32 2048, 2048
          %2169 = vsyncadd %s2138, %s2168
          %s2170 = smul.addr %s2166, 128
          %s2171 = scalar_lea.hbm %s8, %s2170
          %s2172 = sshll.u32 %s2141, 4
          %s2173 = int_to_ptr.vmem [resolvable:$true] %s2172
          %2178 = dma.vmem_to_hbm [thread:$0]  %s2173, 2048, %s2171, %s2138, 128, 128, 8
        $region64: #{tpu_custom_call.1} parent=47 // pred_fallthru
          _
        // Predicated region
        $region65: #{tpu_custom_call.1} parent=47 // pred_check
          %p2179 = pneg %p253
        $region66: #{tpu_custom_call.1} parent=47 // pred_check_branch
          %2181 = sbr.rel (%p2179) target = $region68
        $region67: #{tpu_custom_call.1} parent=47 // pred_region
          %s2182 = smul.u32 16, %s31
          %s2184 = ssub.s32 2048, 2048
          %2185 = vsyncadd %s2143, %s2184
          %s2186 = smul.addr %s2182, 128
          %s2187 = scalar_lea.hbm %s9, %s2186
          %s2188 = sshll.u32 %s2146, 4
          %s2189 = int_to_ptr.vmem [resolvable:$true] %s2188
          %2194 = dma.vmem_to_hbm [thread:$0]  %s2189, 2048, %s2187, %s2143, 128, 128, 8
        $region68: #{tpu_custom_call.1} parent=47 // pred_fallthru
          _
      $region48: #{tpu_custom_call.1} parent=5 // pred_fallthru
        _
      %p2195 = scmp.le.s32.totalorder 2, %s26
      // Predicated region
      $region69: #{tpu_custom_call.1} parent=5 // pred_check
        %p2196 = pneg %p2195
      $region70: #{tpu_custom_call.1} parent=5 // pred_check_branch
        %2198 = sbr.rel (%p2196) target = $region72
      $region71: #{tpu_custom_call.1} parent=5 // pred_region
        %s2199 = ssub.s32 %s26, 2
        // Predicated region
        $region73: #{tpu_custom_call.1} parent=71 // pred_check
          %p2200 = pneg %p207
        $region74: #{tpu_custom_call.1} parent=71 // pred_check_branch
          %2202 = sbr.rel (%p2200) target = $region76
        $region75: #{tpu_custom_call.1} parent=71 // pred_region
          %s2203 = sand.u32 %s192, 1
          %s2204 = scalar_lea.sflag [#allocation4], %s2203
          %s2205 = sand.u32 %s192, 1
          %s2206 = smul.addr %s2205, 128
          %s2207 = scalar_lea.vmem [#allocation7], %s2206
          %2208 = dma.done %s2204, 2048
        $region76: #{tpu_custom_call.1} parent=71 // pred_fallthru
          _
        // Predicated region
        $region77: #{tpu_custom_call.1} parent=71 // pred_check
          %p2209 = pneg %p233
        $region78: #{tpu_custom_call.1} parent=71 // pred_check_branch
          %2211 = sbr.rel (%p2209) target = $region80
        $region79: #{tpu_custom_call.1} parent=71 // pred_region
          %s2212 = sand.u32 %s32, 1
          %s2213 = scalar_lea.sflag [#allocation9], %s2212
          %s2214 = sand.u32 %s218, 1
          %s2215 = smul.addr %s2214, 128
          %s2216 = scalar_lea.vmem [#allocation8], %s2215
          %2217 = dma.done %s2213, 2048
        $region80: #{tpu_custom_call.1} parent=71 // pred_fallthru
          _
        // Predicated region
        $region81: #{tpu_custom_call.1} parent=71 // pred_check
          %p2218 = pneg %p259
        $region82: #{tpu_custom_call.1} parent=71 // pred_check_branch
          %2220 = sbr.rel (%p2218) target = $region84
        $region83: #{tpu_custom_call.1} parent=71 // pred_region
          %s2221 = sand.u32 %s32, 1
          %s2222 = scalar_lea.sflag [#allocation9], %s2221
          %s2223 = sand.u32 %s244, 1
          %s2224 = smul.addr %s2223, 128
          %s2225 = scalar_lea.vmem [#allocation10], %s2224
          %2226 = dma.done %s2222, 2048
        $region84: #{tpu_custom_call.1} parent=71 // pred_fallthru
          _
      $region72: #{tpu_custom_call.1} parent=5 // pred_fallthru
        _
    $region6: #{tpu_custom_call.1} parent=1 // loop_footer
      %s30 = sadd.s32 1, %s26
    $region7: #{tpu_custom_call.1} parent=1 // loop_footer_branch
      %25 = sbr.rel target = $region3
    $region8: #{tpu_custom_call.1} parent=1 // loop_exit
      _
    %2227 = vsyncpa [#allocation3], 1
    %s2228 = scalar_lea.sflag [#allocation3], 1
    %2229 = vsyncpa %s2228, 1
    %2230 = vsyncpa [#allocation6], 1
    %2231 = vsyncpa [#allocation4], 1
    %s2232 = scalar_lea.sflag [#allocation4], 1
    %2233 = vsyncpa %s2232, 1
    %2234 = vsyncpa [#allocation9], 1
    %s2235 = scalar_lea.sflag [#allocation9], 1
    %2236 = vsyncpa %s2235, 1

</llo_original>
